<compile_context>
chip_gen: v7x
topology: tpu7x:2x2x1
jax: 0.10.0
libtpu: 0.0.40
codegen_flags: <defaults>
</compile_context>

<pallas_src>
import functools

import numpy as np
import jax
import jax.numpy as jnp
from jax import lax
from jax.experimental import pallas as pl
from jax.experimental.pallas import tpu as pltpu

THRESH = 0.5
MARGIN = 0.1
SCALE_POS = 2.0
SCALE_NEG = 50.0
EPSILON = 1e-5
_LOG2E = 1.4426950408889634

_LANE = 128  # lane width / padding granule


def _ms_loss_kernel(x_tile_ref, xT_full_ref, lab_col_ref, lab_row_ref,
                    inv_col_ref, inv_row_ref, out_ref, *, tile_m):
    i = pl.program_id(0)

    # Native-dtype MXU matmul, f32 accumulate.  RHS is pre-transposed (Dp, Bp),
    # so this is a plain layout-natural contraction.
    dots = jnp.dot(x_tile_ref[...], xT_full_ref[...],
                   preferred_element_type=jnp.float32)           # (TM, Bp)

    # Post-matmul cosine scaling with precomputed inverse norms.
    inv_c = inv_col_ref[...]                                     # (TM, 1) f32
    inv_r = inv_row_ref[...]                                     # (1, Bp) f32
    sim = dots * inv_c * inv_r                                   # (TM, Bp)

    lab_c = lab_col_ref[...]                                     # (TM, 1)
    lab_r = lab_row_ref[...]                                     # (1, Bp)
    same = lab_c == lab_r
    col_valid = lab_r >= 0          # padded columns carry the -1 sentinel label

    # Explicit diagonal (self-pair) exclusion: robust even if the scaled
    # diagonal rounds slightly below 1 - EPSILON.
    col_ids = lax.broadcasted_iota(jnp.int32, sim.shape, 1)
    row_ids = i * tile_m + lax.broadcasted_iota(jnp.int32, (tile_m, 1), 0)
    not_self = col_ids != row_ids

    neg_mask = jnp.logical_and(jnp.logical_not(same), col_valid)
    pos_mask = jnp.logical_and(jnp.logical_and(same, col_valid),
                               jnp.logical_and(not_self, sim < (1.0 - EPSILON)))

    big = jnp.float32(1e30)
    # Row-wise hardest negative / easiest positive; +/-1e30 sentinels reproduce
    # the "len(...) >= 1" guards of the reference.
    max_neg = jnp.max(jnp.where(neg_mask, sim, -big), axis=1, keepdims=True)  # (TM,1)
    min_pos = jnp.min(jnp.where(pos_mask, sim, big), axis=1, keepdims=True)   # (TM,1)

    d = sim - THRESH                                             # shared subexpression
    # Fold constants into the per-row thresholds so `d` is reused directly:
    #   sim - MARGIN < max_neg  <=>  d < max_neg + (MARGIN - THRESH)
    #   sim + MARGIN > min_pos  <=>  d > min_pos - (MARGIN + THRESH)
    thr_pos = max_neg + (MARGIN - THRESH)                        # (TM, 1)
    thr_neg = min_pos - (MARGIN + THRESH)                        # (TM, 1)
    pos_sel = jnp.logical_and(pos_mask, d < thr_pos)
    neg_sel = jnp.logical_and(neg_mask, d > thr_neg)

    # exp(k * d) == exp2((k * log2e) * d): fold the scale, keep work on the EUP.
    pos_row = jnp.sum(jnp.where(pos_sel, jnp.exp2((-SCALE_POS * _LOG2E) * d), 0.0),
                      axis=1, keepdims=True)                     # (TM, 1)
    neg_row = jnp.sum(jnp.where(neg_sel, jnp.exp2((SCALE_NEG * _LOG2E) * d), 0.0),
                      axis=1, keepdims=True)                     # (TM, 1)

    # Empty selections contribute log(1 + 0) = 0 (matches the reference).
    # Padded anchor rows have no valid positives -> both terms are exactly 0,
    # so no explicit row-valid mask is needed.
    out_ref[...] = (1.0 / SCALE_POS) * jnp.log(1.0 + pos_row) \
                 + (1.0 / SCALE_NEG) * jnp.log(1.0 + neg_row)


def _make_specs(TM, Dp, Bp, single_buffer):
    """BlockSpecs; constant-index blocks optionally single-buffered."""
    def resident(shape):
        if single_buffer:
            return pl.BlockSpec(shape, lambda i: (0, 0),
                                pipeline_mode=pl.Buffered(1))
        return pl.BlockSpec(shape, lambda i: (0, 0))

    in_specs = [
        pl.BlockSpec((TM, Dp), lambda i: (i, 0)),   # anchor row tile (native dtype)
        resident((Dp, Bp)),                         # pre-transposed feats, VMEM-resident
        pl.BlockSpec((TM, 1), lambda i: (i, 0)),    # anchor labels (column)
        resident((1, Bp)),                          # all labels (row)
        pl.BlockSpec((TM, 1), lambda i: (i, 0)),    # anchor inverse norms
        resident((1, Bp)),                          # all inverse norms
    ]
    out_specs = pl.BlockSpec((TM, 1), lambda i: (i, 0))
    return in_specs, out_specs


def multi_similarity_loss(feats, labels, *, tile_m=128):
    """feats: (B, D) float, labels: (B,) int (non-negative) -> scalar f32 loss.

    tile_m: anchor-row tile. 128 fills the v5e MXU; 256 is a good choice on
    v6e for large B (more VMEM headroom, fewer grid steps).
    """
    B, D = feats.shape
    Bp = ((B + _LANE - 1) // _LANE) * _LANE
    Dp = ((D + _LANE - 1) // _LANE) * _LANE

    # Row tile: must divide Bp; ensure >= 2 grid steps so both v7x TCs get work.
    TM = min(tile_m, Bp)
    if Bp % TM:
        TM = _LANE
    if Bp // TM < 2:
        TM = max(TM // 2, 8)
    grid = Bp // TM

    # Zero-pad features; pad labels with -1 (assumes real labels are >= 0).
    # No dtype cast in the wrapper: the MXU consumes the native dtype.
    feats_p = jnp.pad(feats, ((0, Bp - B), (0, Dp - D)))
    featsT_p = feats_p.T                                     # (Dp, Bp) resident RHS
    lab_p = jnp.pad(labels.astype(jnp.int32), (0, Bp - B), constant_values=-1)
    lab_col = lab_p.reshape(Bp, 1)
    lab_row = lab_p.reshape(1, Bp)

    # Per-row inverse norms, computed ONCE (clamp(sumsq,1e-24) == clamp(norm,1e-12)).
    sq = jnp.sum(feats_p.astype(jnp.float32) ** 2, axis=1)
    inv = lax.rsqrt(jnp.maximum(sq, 1e-24))
    inv_col = inv.reshape(Bp, 1)
    inv_row = inv.reshape(1, Bp)

    # VMEM budget from actual buffer sizes (counts double-buffering as headroom
    # for the fallback path); capped at 64 MiB (v7x physical VMEM per core).
    itemsize = jnp.dtype(feats.dtype).itemsize
    resident_bytes = Bp * Dp * itemsize + 2 * Bp * 4          # RHS + label/inv rows
    tile_bytes = TM * Dp * itemsize + 3 * TM * 4              # LHS tile + cols + out
    interm_bytes = 8 * TM * Bp * 4                            # sim / masks / temps
    vmem_bytes = 2 * (resident_bytes + tile_bytes) + interm_bytes + (4 << 20)
    vmem_bytes = int(min(max(vmem_bytes, 16 << 20), 64 << 20))

    kernel = functools.partial(_ms_loss_kernel, tile_m=TM)

    def run(single_buffer):
        in_specs, out_specs = _make_specs(TM, Dp, Bp, single_buffer)
        return pl.pallas_call(
            kernel,
            out_shape=jax.ShapeDtypeStruct((Bp, 1), jnp.float32),
            grid_spec=pltpu.PrefetchScalarGridSpec(
                num_scalar_prefetch=0,
                grid=(grid,),
                in_specs=in_specs,
                out_specs=out_specs,
            ),
            compiler_params=pltpu.CompilerParams(
                dimension_semantics=("parallel",),        # shard tiles across TCs
                vmem_limit_bytes=vmem_bytes,
            ),
        )(feats_p, featsT_p, lab_col, lab_row, inv_col, inv_row)

    try:
        row_losses = run(single_buffer=True)
    except Exception:
        # pipeline_mode=pl.Buffered(1) unsupported on this JAX/Mosaic build:
        # fall back to default double-buffering (functionally identical).
        row_losses = run(single_buffer=False)

    # Padded rows contribute exactly 0; tiny final reduction stays in JAX.
    return jnp.sum(row_losses) / jnp.float32(B)


def _reference_loss(feats_np, labels_np):
    """Literal port of the PyTorch forward (python loop, float64)."""
    f = np.asarray(feats_np, dtype=np.float64)
    lab = np.asarray(labels_np)
    B = f.shape[0]
    n = np.maximum(np.linalg.norm(f, axis=1, keepdims=True), 1e-12)
    xn = f / n
    sim = xn @ xn.T
    losses = []
    for i in range(B):
        pos_pair_ = sim[i][lab == lab[i]]
        pos_pair_ = pos_pair_[pos_pair_ < 1 - EPSILON]
        neg_pair_ = sim[i][lab != lab[i]]
        if len(neg_pair_) >= 1:
            pos_pair = pos_pair_[pos_pair_ - MARGIN < neg_pair_.max()]
            if len(pos_pair) >= 1:
                losses.append(
                    1.0 / SCALE_POS
                    * np.log(1 + np.sum(np.exp(-SCALE_POS * (pos_pair - THRESH)))))
        if len(pos_pair_) >= 1:
            neg_pair = neg_pair_[neg_pair_ + MARGIN > pos_pair_.min()]
            if len(neg_pair) >= 1:
                losses.append(
                    1.0 / SCALE_NEG
                    * np.log(1 + np.sum(np.exp(SCALE_NEG * (neg_pair - THRESH)))))
    if len(losses) == 0:
        return 0.0
    return float(sum(losses) / B)


if __name__ == "__main__":
    # Case 1: small shape from the module spec (Bp=128 -> TM=64, grid=(2,)).
    B, D = 8, 32
    key = jax.random.PRNGKey(0)
    feats = jax.random.normal(key, (B, D), dtype=jnp.float32)
    labels = jnp.array([0, 0, 1, 1, 2, 2, 0, 1], dtype=jnp.int32)

    loss = jax.block_until_ready(multi_similarity_loss(feats, labels))
    ref = _reference_loss(np.asarray(feats), np.asarray(labels))
    assert np.allclose(float(loss), ref, rtol=1e-3, atol=1e-5), (float(loss), ref)

    # Case 2: exercises multi-tile grid (Bp=256, TM=128, grid=(2,)) and padding.
    B2, D2 = 200, 48
    k1, k2 = jax.random.split(jax.random.PRNGKey(0))
    feats2 = jax.random.normal(k1, (B2, D2), dtype=jnp.float32)
    labels2 = jax.random.randint(k2, (B2,), 0, 5, dtype=jnp.int32)

    loss2 = jax.block_until_ready(multi_similarity_loss(feats2, labels2))
    ref2 = _reference_loss(np.asarray(feats2), np.asarray(labels2))
    assert np.allclose(float(loss2), ref2, rtol=1e-3, atol=1e-5), (float(loss2), ref2)

    print("KERNEL_OK")
</pallas_src>

<mosaic_0001>
module attributes {stable_mosaic.version = 11 : i64} {
  func.func @_ms_loss_kernel(%arg0: i32, %arg1: memref<64x128xf32, #tpu.memory_space<vmem>>, %arg2: memref<128x128xf32, #tpu.memory_space<vmem>>, %arg3: memref<64x1xi32, #tpu.memory_space<vmem>>, %arg4: memref<1x128xi32, #tpu.memory_space<vmem>>, %arg5: memref<64x1xf32, #tpu.memory_space<vmem>>, %arg6: memref<1x128xf32, #tpu.memory_space<vmem>>, %arg7: memref<64x1xf32, #tpu.memory_space<vmem>>) attributes {dimension_semantics = [#tpu.dimension_semantics<parallel>], iteration_bounds = array<i64: 2>, scalar_prefetch = 0 : i64, scratch_operands = 0 : i64, tpu.core_type = #tpu.core_type<tc>, window_params = [{transform_indices = @transform_0, window_bounds = array<i64: 64, 128>}, {pipeline_mode = #tpu.pipeline_mode<synchronous>, transform_indices = @transform_1, window_bounds = array<i64: 128, 128>}, {transform_indices = @transform_2, window_bounds = array<i64: 64, 1>}, {pipeline_mode = #tpu.pipeline_mode<synchronous>, transform_indices = @transform_3, window_bounds = array<i64: 1, 128>}, {transform_indices = @transform_4, window_bounds = array<i64: 64, 1>}, {pipeline_mode = #tpu.pipeline_mode<synchronous>, transform_indices = @transform_5, window_bounds = array<i64: 1, 128>}, {transform_indices = @transform_6, window_bounds = array<i64: 64, 1>}]} {
    %c0 = arith.constant 0 : index
    %c0_0 = arith.constant 0 : index
    %0 = vector.load %arg1[%c0, %c0_0] : memref<64x128xf32, #tpu.memory_space<vmem>>, vector<64x128xf32>
    %c0_1 = arith.constant 0 : index
    %c0_2 = arith.constant 0 : index
    %1 = vector.load %arg2[%c0_1, %c0_2] : memref<128x128xf32, #tpu.memory_space<vmem>>, vector<128x128xf32>
    %cst = arith.constant dense<0.000000e+00> : vector<64x128xf32>
    %2 = tpu.matmul %0, %1, %cst {dimension_numbers = #tpu.dot_dimension_numbers<[1], [0], [0], [1], [0, 0, 1, 1], [], []>} : vector<64x128xf32>, vector<128x128xf32>, vector<64x128xf32> -> vector<64x128xf32>
    %c0_3 = arith.constant 0 : index
    %c0_4 = arith.constant 0 : index
    %3 = vector.load %arg5[%c0_3, %c0_4] : memref<64x1xf32, #tpu.memory_space<vmem>>, vector<64x1xf32>
    %c0_5 = arith.constant 0 : index
    %c0_6 = arith.constant 0 : index
    %4 = vector.load %arg6[%c0_5, %c0_6] : memref<1x128xf32, #tpu.memory_space<vmem>>, vector<1x128xf32>
    %5 = vector.broadcast %3 : vector<64x1xf32> to vector<64x128xf32>
    %6 = arith.mulf %2, %5 : vector<64x128xf32>
    %7 = vector.broadcast %4 : vector<1x128xf32> to vector<64x128xf32>
    %8 = arith.mulf %6, %7 : vector<64x128xf32>
    %c0_7 = arith.constant 0 : index
    %c0_8 = arith.constant 0 : index
    %9 = vector.load %arg3[%c0_7, %c0_8] : memref<64x1xi32, #tpu.memory_space<vmem>>, vector<64x1xi32>
    %c0_9 = arith.constant 0 : index
    %c0_10 = arith.constant 0 : index
    %10 = vector.load %arg4[%c0_9, %c0_10] : memref<1x128xi32, #tpu.memory_space<vmem>>, vector<1x128xi32>
    %11 = vector.broadcast %9 : vector<64x1xi32> to vector<64x128xi32>
    %12 = vector.broadcast %10 : vector<1x128xi32> to vector<64x128xi32>
    %13 = arith.cmpi eq, %11, %12 : vector<64x128xi32>
    %c0_i32 = arith.constant 0 : i32
    %14 = vector.broadcast %c0_i32 : i32 to vector<1x128xi32>
    %15 = arith.cmpi sge, %10, %14 : vector<1x128xi32>
    %16 = tpu.iota {dimensions = array<i32: 1>} : vector<64x128xi32>
    %c64_i32 = arith.constant 64 : i32
    %17 = arith.muli %arg0, %c64_i32 : i32
    %18 = tpu.iota {dimensions = array<i32: 0>} : vector<64x1xi32>
    %19 = vector.broadcast %17 : i32 to vector<64x1xi32>
    %20 = arith.addi %19, %18 : vector<64x1xi32>
    %21 = vector.broadcast %20 : vector<64x1xi32> to vector<64x128xi32>
    %22 = arith.cmpi ne, %16, %21 : vector<64x128xi32>
    %cst_11 = arith.constant dense<true> : vector<64x128xi1>
    %23 = arith.xori %13, %cst_11 : vector<64x128xi1>
    %24 = vector.broadcast %15 : vector<1x128xi1> to vector<64x128xi1>
    %25 = arith.andi %23, %24 : vector<64x128xi1>
    %26 = vector.broadcast %15 : vector<1x128xi1> to vector<64x128xi1>
    %27 = arith.andi %13, %26 : vector<64x128xi1>
    %cst_12 = arith.constant 0.999989986 : f32
    %28 = vector.broadcast %cst_12 : f32 to vector<64x128xf32>
    %29 = arith.cmpf olt, %8, %28 : vector<64x128xf32>
    %30 = arith.andi %22, %29 : vector<64x128xi1>
    %31 = arith.andi %27, %30 : vector<64x128xi1>
    %cst_13 = arith.constant 0.000000e+00 : f32
    %cst_14 = arith.constant 1.000000e+30 : f32
    %32 = arith.subf %cst_13, %cst_14 : f32
    %33 = vector.broadcast %32 : f32 to vector<64x128xf32>
    %34 = arith.select %25, %8, %33 : vector<64x128xi1>, vector<64x128xf32>
    %cst_15 = arith.constant dense<0xFF800000> : vector<64xf32>
    %35 = vector.multi_reduction <maximumf>, %34, %cst_15 [1] : vector<64x128xf32> to vector<64xf32>
    %36 = vector.shape_cast %35 : vector<64xf32> to vector<64x1xf32>
    %cst_16 = arith.constant 1.000000e+30 : f32
    %37 = vector.broadcast %cst_16 : f32 to vector<64x128xf32>
    %38 = arith.select %31, %8, %37 : vector<64x128xi1>, vector<64x128xf32>
    %cst_17 = arith.constant dense<0x7F800000> : vector<64xf32>
    %39 = vector.multi_reduction <minimumf>, %38, %cst_17 [1] : vector<64x128xf32> to vector<64xf32>
    %40 = vector.shape_cast %39 : vector<64xf32> to vector<64x1xf32>
    %cst_18 = arith.constant 5.000000e-01 : f32
    %41 = vector.broadcast %cst_18 : f32 to vector<64x128xf32>
    %42 = arith.subf %8, %41 : vector<64x128xf32>
    %cst_19 = arith.constant -4.000000e-01 : f32
    %43 = vector.broadcast %cst_19 : f32 to vector<64x1xf32>
    %44 = arith.addf %36, %43 : vector<64x1xf32>
    %cst_20 = arith.constant 6.000000e-01 : f32
    %45 = vector.broadcast %cst_20 : f32 to vector<64x1xf32>
    %46 = arith.subf %40, %45 : vector<64x1xf32>
    %47 = vector.broadcast %44 : vector<64x1xf32> to vector<64x128xf32>
    %48 = arith.cmpf olt, %42, %47 : vector<64x128xf32>
    %49 = arith.andi %31, %48 : vector<64x128xi1>
    %50 = vector.broadcast %46 : vector<64x1xf32> to vector<64x128xf32>
    %51 = arith.cmpf ogt, %42, %50 : vector<64x128xf32>
    %52 = arith.andi %25, %51 : vector<64x128xi1>
    %cst_21 = arith.constant -2.885390e+00 : f32
    %53 = vector.broadcast %cst_21 : f32 to vector<64x128xf32>
    %54 = arith.mulf %53, %42 : vector<64x128xf32>
    %55 = math.exp2 %54 : vector<64x128xf32>
    %cst_22 = arith.constant 0.000000e+00 : f32
    %56 = vector.broadcast %cst_22 : f32 to vector<64x128xf32>
    %57 = arith.select %49, %55, %56 : vector<64x128xi1>, vector<64x128xf32>
    %cst_23 = arith.constant dense<0.000000e+00> : vector<64xf32>
    %58 = vector.multi_reduction <add>, %57, %cst_23 [1] : vector<64x128xf32> to vector<64xf32>
    %59 = vector.shape_cast %58 : vector<64xf32> to vector<64x1xf32>
    %cst_24 = arith.constant 72.1347503 : f32
    %60 = vector.broadcast %cst_24 : f32 to vector<64x128xf32>
    %61 = arith.mulf %60, %42 : vector<64x128xf32>
    %62 = math.exp2 %61 : vector<64x128xf32>
    %cst_25 = arith.constant 0.000000e+00 : f32
    %63 = vector.broadcast %cst_25 : f32 to vector<64x128xf32>
    %64 = arith.select %52, %62, %63 : vector<64x128xi1>, vector<64x128xf32>
    %cst_26 = arith.constant dense<0.000000e+00> : vector<64xf32>
    %65 = vector.multi_reduction <add>, %64, %cst_26 [1] : vector<64x128xf32> to vector<64xf32>
    %66 = vector.shape_cast %65 : vector<64xf32> to vector<64x1xf32>
    %cst_27 = arith.constant 1.000000e+00 : f32
    %67 = vector.broadcast %cst_27 : f32 to vector<64x1xf32>
    %68 = arith.addf %67, %59 : vector<64x1xf32>
    %69 = math.log %68 : vector<64x1xf32>
    %cst_28 = arith.constant 5.000000e-01 : f32
    %70 = vector.broadcast %cst_28 : f32 to vector<64x1xf32>
    %71 = arith.mulf %70, %69 : vector<64x1xf32>
    %cst_29 = arith.constant 1.000000e+00 : f32
    %72 = vector.broadcast %cst_29 : f32 to vector<64x1xf32>
    %73 = arith.addf %72, %66 : vector<64x1xf32>
    %74 = math.log %73 : vector<64x1xf32>
    %cst_30 = arith.constant 2.000000e-02 : f32
    %75 = vector.broadcast %cst_30 : f32 to vector<64x1xf32>
    %76 = arith.mulf %75, %74 : vector<64x1xf32>
    %77 = arith.addf %71, %76 : vector<64x1xf32>
    %c0_31 = arith.constant 0 : index
    %c0_32 = arith.constant 0 : index
    %78 = vector.load %arg7[%c0_31, %c0_32] : memref<64x1xf32, #tpu.memory_space<vmem>>, vector<64x1xf32>
    tpu.vector_store %arg7[%c0_31, %c0_32], %77 {strides = array<i32>} : memref<64x1xf32, #tpu.memory_space<vmem>>, vector<64x1xf32>,
    return
  }
  func.func @transform_0(%arg0: i32) -> (i32, i32) {
    %c0_i32 = arith.constant 0 : i32
    %c0_i32_0 = arith.constant 0 : i32
    return %arg0, %c0_i32 : i32, i32
  }
  func.func @transform_1(%arg0: i32) -> (i32, i32) {
    %c0_i32 = arith.constant 0 : i32
    %c0_i32_0 = arith.constant 0 : i32
    %c0_i32_1 = arith.constant 0 : i32
    return %c0_i32, %c0_i32_0 : i32, i32
  }
  func.func @transform_2(%arg0: i32) -> (i32, i32) {
    %c0_i32 = arith.constant 0 : i32
    %c0_i32_0 = arith.constant 0 : i32
    return %arg0, %c0_i32 : i32, i32
  }
  func.func @transform_3(%arg0: i32) -> (i32, i32) {
    %c0_i32 = arith.constant 0 : i32
    %c0_i32_0 = arith.constant 0 : i32
    %c0_i32_1 = arith.constant 0 : i32
    return %c0_i32, %c0_i32_0 : i32, i32
  }
  func.func @transform_4(%arg0: i32) -> (i32, i32) {
    %c0_i32 = arith.constant 0 : i32
    %c0_i32_0 = arith.constant 0 : i32
    return %arg0, %c0_i32 : i32, i32
  }
  func.func @transform_5(%arg0: i32) -> (i32, i32) {
    %c0_i32 = arith.constant 0 : i32
    %c0_i32_0 = arith.constant 0 : i32
    %c0_i32_1 = arith.constant 0 : i32
    return %c0_i32, %c0_i32_0 : i32, i32
  }
  func.func @transform_6(%arg0: i32) -> (i32, i32) {
    %c0_i32 = arith.constant 0 : i32
    %c0_i32_0 = arith.constant 0 : i32
    return %arg0, %c0_i32 : i32, i32
  }
}

module attributes {stable_mosaic.version = 11 : i64} {
  func.func @_ms_loss_kernel(%arg0: i32, %arg1: memref<64x128xf32, #tpu.memory_space<vmem>>, %arg2: memref<128x128xf32, #tpu.memory_space<vmem>>, %arg3: memref<64x1xi32, #tpu.memory_space<vmem>>, %arg4: memref<1x128xi32, #tpu.memory_space<vmem>>, %arg5: memref<64x1xf32, #tpu.memory_space<vmem>>, %arg6: memref<1x128xf32, #tpu.memory_space<vmem>>, %arg7: memref<64x1xf32, #tpu.memory_space<vmem>>) attributes {dimension_semantics = [#tpu.dimension_semantics<parallel>], iteration_bounds = array<i64: 2>, scalar_prefetch = 0 : i64, scratch_operands = 0 : i64, tpu.core_type = #tpu.core_type<tc>, window_params = [{transform_indices = @transform_0, window_bounds = array<i64: 64, 128>}, {pipeline_mode = #tpu.pipeline_mode<synchronous>, transform_indices = @transform_1, window_bounds = array<i64: 128, 128>}, {transform_indices = @transform_2, window_bounds = array<i64: 64, 1>}, {pipeline_mode = #tpu.pipeline_mode<synchronous>, transform_indices = @transform_3, window_bounds = array<i64: 1, 128>}, {transform_indices = @transform_4, window_bounds = array<i64: 64, 1>}, {pipeline_mode = #tpu.pipeline_mode<synchronous>, transform_indices = @transform_5, window_bounds = array<i64: 1, 128>}, {transform_indices = @transform_6, window_bounds = array<i64: 64, 1>}]} {
    %c0 = arith.constant 0 : index
    %c0_0 = arith.constant 0 : index
    %0 = vector.load %arg1[%c0, %c0_0] : memref<64x128xf32, #tpu.memory_space<vmem>>, vector<64x128xf32>
    %c0_1 = arith.constant 0 : index
    %c0_2 = arith.constant 0 : index
    %1 = vector.load %arg2[%c0_1, %c0_2] : memref<128x128xf32, #tpu.memory_space<vmem>>, vector<128x128xf32>
    %cst = arith.constant dense<0.000000e+00> : vector<64x128xf32>
    %2 = tpu.matmul %0, %1, %cst {dimension_numbers = #tpu.dot_dimension_numbers<[1], [0], [0], [1], [0, 0, 1, 1], [], []>} : vector<64x128xf32>, vector<128x128xf32>, vector<64x128xf32> -> vector<64x128xf32>
    %c0_3 = arith.constant 0 : index
    %c0_4 = arith.constant 0 : index
    %3 = vector.load %arg5[%c0_3, %c0_4] : memref<64x1xf32, #tpu.memory_space<vmem>>, vector<64x1xf32>
    %c0_5 = arith.constant 0 : index
    %c0_6 = arith.constant 0 : index
    %4 = vector.load %arg6[%c0_5, %c0_6] : memref<1x128xf32, #tpu.memory_space<vmem>>, vector<1x128xf32>
    %5 = vector.broadcast %3 : vector<64x1xf32> to vector<64x128xf32>
    %6 = arith.mulf %2, %5 : vector<64x128xf32>
    %7 = vector.broadcast %4 : vector<1x128xf32> to vector<64x128xf32>
    %8 = arith.mulf %6, %7 : vector<64x128xf32>
    %c0_7 = arith.constant 0 : index
    %c0_8 = arith.constant 0 : index
    %9 = vector.load %arg3[%c0_7, %c0_8] : memref<64x1xi32, #tpu.memory_space<vmem>>, vector<64x1xi32>
    %c0_9 = arith.constant 0 : index
    %c0_10 = arith.constant 0 : index
    %10 = vector.load %arg4[%c0_9, %c0_10] : memref<1x128xi32, #tpu.memory_space<vmem>>, vector<1x128xi32>
    %11 = vector.broadcast %9 : vector<64x1xi32> to vector<64x128xi32>
    %12 = vector.broadcast %10 : vector<1x128xi32> to vector<64x128xi32>
    %13 = arith.cmpi eq, %11, %12 : vector<64x128xi32>
    %c0_i32 = arith.constant 0 : i32
    %14 = vector.broadcast %c0_i32 : i32 to vector<1x128xi32>
    %15 = arith.cmpi sge, %10, %14 : vector<1x128xi32>
    %16 = tpu.iota {dimensions = array<i32: 1>} : vector<64x128xi32>
    %c64_i32 = arith.constant 64 : i32
    %17 = arith.muli %arg0, %c64_i32 : i32
    %18 = tpu.iota {dimensions = array<i32: 0>} : vector<64x1xi32>
    %19 = vector.broadcast %17 : i32 to vector<64x1xi32>
    %20 = arith.addi %19, %18 : vector<64x1xi32>
    %21 = vector.broadcast %20 : vector<64x1xi32> to vector<64x128xi32>
    %22 = arith.cmpi ne, %16, %21 : vector<64x128xi32>
    %cst_11 = arith.constant dense<true> : vector<64x128xi1>
    %23 = arith.xori %13, %cst_11 : vector<64x128xi1>
    %24 = vector.broadcast %15 : vector<1x128xi1> to vector<64x128xi1>
    %25 = arith.andi %23, %24 : vector<64x128xi1>
    %26 = vector.broadcast %15 : vector<1x128xi1> to vector<64x128xi1>
    %27 = arith.andi %13, %26 : vector<64x128xi1>
    %cst_12 = arith.constant 0.999989986 : f32
    %28 = vector.broadcast %cst_12 : f32 to vector<64x128xf32>
    %29 = arith.cmpf olt, %8, %28 : vector<64x128xf32>
    %30 = arith.andi %22, %29 : vector<64x128xi1>
    %31 = arith.andi %27, %30 : vector<64x128xi1>
    %cst_13 = arith.constant 0.000000e+00 : f32
    %cst_14 = arith.constant 1.000000e+30 : f32
    %32 = arith.subf %cst_13, %cst_14 : f32
    %33 = vector.broadcast %32 : f32 to vector<64x128xf32>
    %34 = arith.select %25, %8, %33 : vector<64x128xi1>, vector<64x128xf32>
    %cst_15 = arith.constant dense<0xFF800000> : vector<64xf32>
    %35 = vector.multi_reduction <maximumf>, %34, %cst_15 [1] : vector<64x128xf32> to vector<64xf32>
    %36 = vector.shape_cast %35 : vector<64xf32> to vector<64x1xf32>
    %cst_16 = arith.constant 1.000000e+30 : f32
    %37 = vector.broadcast %cst_16 : f32 to vector<64x128xf32>
    %38 = arith.select %31, %8, %37 : vector<64x128xi1>, vector<64x128xf32>
    %cst_17 = arith.constant dense<0x7F800000> : vector<64xf32>
    %39 = vector.multi_reduction <minimumf>, %38, %cst_17 [1] : vector<64x128xf32> to vector<64xf32>
    %40 = vector.shape_cast %39 : vector<64xf32> to vector<64x1xf32>
    %cst_18 = arith.constant 5.000000e-01 : f32
    %41 = vector.broadcast %cst_18 : f32 to vector<64x128xf32>
    %42 = arith.subf %8, %41 : vector<64x128xf32>
    %cst_19 = arith.constant -4.000000e-01 : f32
    %43 = vector.broadcast %cst_19 : f32 to vector<64x1xf32>
    %44 = arith.addf %36, %43 : vector<64x1xf32>
    %cst_20 = arith.constant 6.000000e-01 : f32
    %45 = vector.broadcast %cst_20 : f32 to vector<64x1xf32>
    %46 = arith.subf %40, %45 : vector<64x1xf32>
    %47 = vector.broadcast %44 : vector<64x1xf32> to vector<64x128xf32>
    %48 = arith.cmpf olt, %42, %47 : vector<64x128xf32>
    %49 = arith.andi %31, %48 : vector<64x128xi1>
    %50 = vector.broadcast %46 : vector<64x1xf32> to vector<64x128xf32>
    %51 = arith.cmpf ogt, %42, %50 : vector<64x128xf32>
    %52 = arith.andi %25, %51 : vector<64x128xi1>
    %cst_21 = arith.constant -2.885390e+00 : f32
    %53 = vector.broadcast %cst_21 : f32 to vector<64x128xf32>
    %54 = arith.mulf %53, %42 : vector<64x128xf32>
    %55 = math.exp2 %54 : vector<64x128xf32>
    %cst_22 = arith.constant 0.000000e+00 : f32
    %56 = vector.broadcast %cst_22 : f32 to vector<64x128xf32>
    %57 = arith.select %49, %55, %56 : vector<64x128xi1>, vector<64x128xf32>
    %cst_23 = arith.constant dense<0.000000e+00> : vector<64xf32>
    %58 = vector.multi_reduction <add>, %57, %cst_23 [1] : vector<64x128xf32> to vector<64xf32>
    %59 = vector.shape_cast %58 : vector<64xf32> to vector<64x1xf32>
    %cst_24 = arith.constant 72.1347503 : f32
    %60 = vector.broadcast %cst_24 : f32 to vector<64x128xf32>
    %61 = arith.mulf %60, %42 : vector<64x128xf32>
    %62 = math.exp2 %61 : vector<64x128xf32>
    %cst_25 = arith.constant 0.000000e+00 : f32
    %63 = vector.broadcast %cst_25 : f32 to vector<64x128xf32>
    %64 = arith.select %52, %62, %63 : vector<64x128xi1>, vector<64x128xf32>
    %cst_26 = arith.constant dense<0.000000e+00> : vector<64xf32>
    %65 = vector.multi_reduction <add>, %64, %cst_26 [1] : vector<64x128xf32> to vector<64xf32>
    %66 = vector.shape_cast %65 : vector<64xf32> to vector<64x1xf32>
    %cst_27 = arith.constant 1.000000e+00 : f32
    %67 = vector.broadcast %cst_27 : f32 to vector<64x1xf32>
    %68 = arith.addf %67, %59 : vector<64x1xf32>
    %69 = math.log %68 : vector<64x1xf32>
    %cst_28 = arith.constant 5.000000e-01 : f32
    %70 = vector.broadcast %cst_28 : f32 to vector<64x1xf32>
    %71 = arith.mulf %70, %69 : vector<64x1xf32>
    %cst_29 = arith.constant 1.000000e+00 : f32
    %72 = vector.broadcast %cst_29 : f32 to vector<64x1xf32>
    %73 = arith.addf %72, %66 : vector<64x1xf32>
    %74 = math.log %73 : vector<64x1xf32>
    %cst_30 = arith.constant 2.000000e-02 : f32
    %75 = vector.broadcast %cst_30 : f32 to vector<64x1xf32>
    %76 = arith.mulf %75, %74 : vector<64x1xf32>
    %77 = arith.addf %71, %76 : vector<64x1xf32>
    %c0_31 = arith.constant 0 : index
    %c0_32 = arith.constant 0 : index
    %78 = vector.load %arg7[%c0_31, %c0_32] : memref<64x1xf32, #tpu.memory_space<vmem>>, vector<64x1xf32>
    tpu.vector_store %arg7[%c0_31, %c0_32], %77 {strides = array<i32>} : memref<64x1xf32, #tpu.memory_space<vmem>>, vector<64x1xf32>,
    return
  }
  func.func @transform_0(%arg0: i32) -> (i32, i32) {
    %c0_i32 = arith.constant 0 : i32
    %c0_i32_0 = arith.constant 0 : i32
    return %arg0, %c0_i32 : i32, i32
  }
  func.func @transform_1(%arg0: i32) -> (i32, i32) {
    %c0_i32 = arith.constant 0 : i32
    %c0_i32_0 = arith.constant 0 : i32
    %c0_i32_1 = arith.constant 0 : i32
    return %c0_i32, %c0_i32_0 : i32, i32
  }
  func.func @transform_2(%arg0: i32) -> (i32, i32) {
    %c0_i32 = arith.constant 0 : i32
    %c0_i32_0 = arith.constant 0 : i32
    return %arg0, %c0_i32 : i32, i32
  }
  func.func @transform_3(%arg0: i32) -> (i32, i32) {
    %c0_i32 = arith.constant 0 : i32
    %c0_i32_0 = arith.constant 0 : i32
    %c0_i32_1 = arith.constant 0 : i32
    return %c0_i32, %c0_i32_0 : i32, i32
  }
  func.func @transform_4(%arg0: i32) -> (i32, i32) {
    %c0_i32 = arith.constant 0 : i32
    %c0_i32_0 = arith.constant 0 : i32
    return %arg0, %c0_i32 : i32, i32
  }
  func.func @transform_5(%arg0: i32) -> (i32, i32) {
    %c0_i32 = arith.constant 0 : i32
    %c0_i32_0 = arith.constant 0 : i32
    %c0_i32_1 = arith.constant 0 : i32
    return %c0_i32, %c0_i32_0 : i32, i32
  }
  func.func @transform_6(%arg0: i32) -> (i32, i32) {
    %c0_i32 = arith.constant 0 : i32
    %c0_i32_0 = arith.constant 0 : i32
    return %arg0, %c0_i32 : i32, i32
  }
}

</mosaic_0001>

<llo_original>
// kernel: tpu_custom_call.1
$region0: #{tpu_custom_call.1}
  #allocation0 [shape = 'u32[]', space=smem, size = 0x4, offset = 0x4, fixed_abs, tag = 'smem constant byte address 0x4 - core index']
  #allocation1 [shape = 'u32[144,128]{1,0:T(1,128)}', space=vmem, size = 0x12000, scoped, tag = 'internal scratch']
  %s0 = inlined_call_operand.vmem [shape: f32[128,128], index: 0, kind: input, shape index: {}]
  %s1 = inlined_call_operand.vmem [shape: f32[128,128], index: 1, kind: input, shape index: {}]
  %s2 = inlined_call_operand.vmem [shape: s32[128,1], index: 2, kind: input, shape index: {}]
  %s3 = inlined_call_operand.vmem [shape: s32[1,128], index: 3, kind: input, shape index: {}]
  %s4 = inlined_call_operand.vmem [shape: f32[128,1], index: 4, kind: input, shape index: {}]
  %s5 = inlined_call_operand.vmem [shape: f32[1,128], index: 5, kind: input, shape index: {}]
  %s6 = inlined_call_operand.vmem [shape: f32[128,1], index: 6, kind: output, shape index: {}]
  %s7 = sld [smem:[#allocation0]]
  $region57: #{tpu_custom_call.1} parent=0
    _
  %s9 = ssub.s32 1, %s7
  %s10 = scalar_select 0, %s9, %s7
  loop: start=0, step=1, limit=4
  $region2: #{tpu_custom_call.1} parent=0 // loop_pre_header
    _
  $region3: #{tpu_custom_call.1} parent=0 // loop_header
    %s12 = sphi 0, %s16
    %p13 = scmp.ge.s32.totalorder %s12, 4
    %s22 = sphi 0, %s24
    %s25 = sphi 0, %s22
    %s26 = sphi 0, %s25
    %s42 = sphi 0, %s26
    %s46 = sphi 0, %s46
    %s48 = sphi 0, %s46
    %s49 = sphi 0, %s48
    %s63 = sphi 0, %s49
    %s69 = sphi 0, %s71
    %s72 = sphi 0, %s69
    %s73 = sphi 0, %s72
    %s89 = sphi 0, %s73
    %s93 = sphi 0, %s93
    %s95 = sphi 0, %s93
    %s96 = sphi 0, %s95
    %s110 = sphi 0, %s96
    %s116 = sphi 0, %s118
    %s119 = sphi 0, %s116
    %s120 = sphi 0, %s119
    %s136 = sphi 0, %s120
    %s140 = sphi 0, %s140
    %s142 = sphi 0, %s140
    %s143 = sphi 0, %s142
    %s157 = sphi 0, %s143
    %s163 = sphi 0, %s165
    %s166 = sphi 0, %s163
    %s167 = sphi 0, %s166
    %s183 = sphi 0, %s167
  $region4: #{tpu_custom_call.1} parent=0 // loop_header_branch
    %15 = sbr.rel (%p13) target = $region8
  $region5: #{tpu_custom_call.1} parent=0 // loop_body
    %s17 = ssub.s32 %s12, 1
    %s18 = ssub.s32 %s12, 2
    %s19 = sadd.s32 %s12, 1
    %s20 = ssub.s32 %s12, %s19
    %p21 = scmp.eq.s32.totalorder %s20, 0
    %s23 = sadd.s32 %s22, 1
    %s24 = scalar_select %p21, %s22, %s23
    %p27 = pneg %p21
    %p28 = scmp.eq.s32.totalorder %s12, 1
    %p29 = por %p27, %p28
    %p30 = scmp.ne.s32.totalorder %s22, %s25
    %p31 = scmp.eq.s32.totalorder %s12, 0
    %p32 = por %p30, %p31
    %p33 = scmp.ne.s32.totalorder %s22, %s25
    %p34 = scmp.eq.s32.totalorder %s17, 1
    %p35 = por %p33, %p34
    %p36 = scmp.ne.s32.totalorder %s25, %s26
    %p37 = scmp.eq.s32.totalorder %s17, 0
    %p38 = por %p36, %p37
    %p39 = scmp.ne.s32.totalorder %s25, %s26
    %p40 = scmp.eq.s32.totalorder %s18, 1
    %p41 = por %p39, %p40
    %p43 = scmp.ne.s32.totalorder %s26, %s42
    %p44 = scmp.eq.s32.totalorder %s18, 0
    %p45 = por %p43, %p44
    %s47 = sadd.s32 %s46, 1
    %p50 = scmp.eq.s32.totalorder %s12, 1
    %p51 = scmp.ne.s32.totalorder %s46, %s48
    %p52 = scmp.eq.s32.totalorder %s12, 0
    %p53 = por %p51, %p52
    %p54 = scmp.ne.s32.totalorder %s46, %s48
    %p55 = scmp.eq.s32.totalorder %s17, 1
    %p56 = por %p54, %p55
    %p57 = scmp.ne.s32.totalorder %s48, %s49
    %p58 = scmp.eq.s32.totalorder %s17, 0
    %p59 = por %p57, %p58
    %p60 = scmp.ne.s32.totalorder %s48, %s49
    %p61 = scmp.eq.s32.totalorder %s18, 1
    %p62 = por %p60, %p61
    %p64 = scmp.ne.s32.totalorder %s49, %s63
    %p65 = scmp.eq.s32.totalorder %s18, 0
    %p66 = por %p64, %p65
    %s67 = ssub.s32 %s12, %s19
    %p68 = scmp.eq.s32.totalorder %s67, 0
    %s70 = sadd.s32 %s69, 1
    %s71 = scalar_select %p68, %s69, %s70
    %p74 = pneg %p68
    %p75 = scmp.eq.s32.totalorder %s12, 1
    %p76 = por %p74, %p75
    %p77 = scmp.ne.s32.totalorder %s69, %s72
    %p78 = scmp.eq.s32.totalorder %s12, 0
    %p79 = por %p77, %p78
    %p80 = scmp.ne.s32.totalorder %s69, %s72
    %p81 = scmp.eq.s32.totalorder %s17, 1
    %p82 = por %p80, %p81
    %p83 = scmp.ne.s32.totalorder %s72, %s73
    %p84 = scmp.eq.s32.totalorder %s17, 0
    %p85 = por %p83, %p84
    %p86 = scmp.ne.s32.totalorder %s72, %s73
    %p87 = scmp.eq.s32.totalorder %s18, 1
    %p88 = por %p86, %p87
    %p90 = scmp.ne.s32.totalorder %s73, %s89
    %p91 = scmp.eq.s32.totalorder %s18, 0
    %p92 = por %p90, %p91
    %s94 = sadd.s32 %s93, 1
    %p97 = scmp.eq.s32.totalorder %s12, 1
    %p98 = scmp.ne.s32.totalorder %s93, %s95
    %p99 = scmp.eq.s32.totalorder %s12, 0
    %p100 = por %p98, %p99
    %p101 = scmp.ne.s32.totalorder %s93, %s95
    %p102 = scmp.eq.s32.totalorder %s17, 1
    %p103 = por %p101, %p102
    %p104 = scmp.ne.s32.totalorder %s95, %s96
    %p105 = scmp.eq.s32.totalorder %s17, 0
    %p106 = por %p104, %p105
    %p107 = scmp.ne.s32.totalorder %s95, %s96
    %p108 = scmp.eq.s32.totalorder %s18, 1
    %p109 = por %p107, %p108
    %p111 = scmp.ne.s32.totalorder %s96, %s110
    %p112 = scmp.eq.s32.totalorder %s18, 0
    %p113 = por %p111, %p112
    %s114 = ssub.s32 %s12, %s19
    %p115 = scmp.eq.s32.totalorder %s114, 0
    %s117 = sadd.s32 %s116, 1
    %s118 = scalar_select %p115, %s116, %s117
    %p121 = pneg %p115
    %p122 = scmp.eq.s32.totalorder %s12, 1
    %p123 = por %p121, %p122
    %p124 = scmp.ne.s32.totalorder %s116, %s119
    %p125 = scmp.eq.s32.totalorder %s12, 0
    %p126 = por %p124, %p125
    %p127 = scmp.ne.s32.totalorder %s116, %s119
    %p128 = scmp.eq.s32.totalorder %s17, 1
    %p129 = por %p127, %p128
    %p130 = scmp.ne.s32.totalorder %s119, %s120
    %p131 = scmp.eq.s32.totalorder %s17, 0
    %p132 = por %p130, %p131
    %p133 = scmp.ne.s32.totalorder %s119, %s120
    %p134 = scmp.eq.s32.totalorder %s18, 1
    %p135 = por %p133, %p134
    %p137 = scmp.ne.s32.totalorder %s120, %s136
    %p138 = scmp.eq.s32.totalorder %s18, 0
    %p139 = por %p137, %p138
    %s141 = sadd.s32 %s140, 1
    %p144 = scmp.eq.s32.totalorder %s12, 1
    %p145 = scmp.ne.s32.totalorder %s140, %s142
    %p146 = scmp.eq.s32.totalorder %s12, 0
    %p147 = por %p145, %p146
    %p148 = scmp.ne.s32.totalorder %s140, %s142
    %p149 = scmp.eq.s32.totalorder %s17, 1
    %p150 = por %p148, %p149
    %p151 = scmp.ne.s32.totalorder %s142, %s143
    %p152 = scmp.eq.s32.totalorder %s17, 0
    %p153 = por %p151, %p152
    %p154 = scmp.ne.s32.totalorder %s142, %s143
    %p155 = scmp.eq.s32.totalorder %s18, 1
    %p156 = por %p154, %p155
    %p158 = scmp.ne.s32.totalorder %s143, %s157
    %p159 = scmp.eq.s32.totalorder %s18, 0
    %p160 = por %p158, %p159
    %s161 = ssub.s32 %s12, %s19
    %p162 = scmp.eq.s32.totalorder %s161, 0
    %s164 = sadd.s32 %s163, 1
    %s165 = scalar_select %p162, %s163, %s164
    %p168 = pneg %p162
    %p169 = scmp.eq.s32.totalorder %s12, 1
    %p170 = por %p168, %p169
    %p171 = scmp.ne.s32.totalorder %s163, %s166
    %p172 = scmp.eq.s32.totalorder %s12, 0
    %p173 = por %p171, %p172
    %p174 = scmp.ne.s32.totalorder %s163, %s166
    %p175 = scmp.eq.s32.totalorder %s17, 1
    %p176 = por %p174, %p175
    %p177 = scmp.ne.s32.totalorder %s166, %s167
    %p178 = scmp.eq.s32.totalorder %s17, 0
    %p179 = por %p177, %p178
    %p180 = scmp.ne.s32.totalorder %s166, %s167
    %p181 = scmp.eq.s32.totalorder %s18, 1
    %p182 = por %p180, %p181
    %p184 = scmp.ne.s32.totalorder %s167, %s183
    %p185 = scmp.eq.s32.totalorder %s18, 0
    %p186 = por %p184, %p185
    %p187 = scmp.le.s32.totalorder 1, %s12
    %p188 = scmp.lt.s32.totalorder %s12, 3
    %p189 = pnand %p187, %p188
    %p190 = pneg %p189
    // Predicated region
    $region9: #{tpu_custom_call.1} parent=5 // pred_check
      _
    $region10: #{tpu_custom_call.1} parent=5 // pred_check_branch
      %192 = sbr.rel (%p189) target = $region12
    $region11: #{tpu_custom_call.1} parent=5 // pred_region
      %s193 = ssub.s32 %s12, 1
      // Predicated region
      $region13: #{tpu_custom_call.1} parent=11 // pred_check
        %p194 = pneg %p59
      $region14: #{tpu_custom_call.1} parent=11 // pred_check_branch
        %196 = sbr.rel (%p194) target = $region16
      $region15: #{tpu_custom_call.1} parent=11 // pred_region
        _
      $region16: #{tpu_custom_call.1} parent=11 // pred_fallthru
        _
      // Predicated region
      $region17: #{tpu_custom_call.1} parent=11 // pred_check
        %p197 = pneg %p106
      $region18: #{tpu_custom_call.1} parent=11 // pred_check_branch
        %199 = sbr.rel (%p197) target = $region20
      $region19: #{tpu_custom_call.1} parent=11 // pred_region
        _
      $region20: #{tpu_custom_call.1} parent=11 // pred_fallthru
        _
      // Predicated region
      $region21: #{tpu_custom_call.1} parent=11 // pred_check
        %p200 = pneg %p153
      $region22: #{tpu_custom_call.1} parent=11 // pred_check_branch
        %202 = sbr.rel (%p200) target = $region24
      $region23: #{tpu_custom_call.1} parent=11 // pred_region
        _
      $region24: #{tpu_custom_call.1} parent=11 // pred_fallthru
        _
    $region12: #{tpu_custom_call.1} parent=5 // pred_fallthru
      _
    %p203 = scmp.lt.s32.totalorder %s12, 2
    // Predicated region
    $region25: #{tpu_custom_call.1} parent=5 // pred_check
      %p204 = pneg %p203
    $region26: #{tpu_custom_call.1} parent=5 // pred_check_branch
      %206 = sbr.rel (%p204) target = $region28
    $region27: #{tpu_custom_call.1} parent=5 // pred_region
      // Predicated region
      $region29: #{tpu_custom_call.1} parent=27 // pred_check
        %p207 = pneg %p32
      $region30: #{tpu_custom_call.1} parent=27 // pred_check_branch
        %209 = sbr.rel (%p207) target = $region32
      $region31: #{tpu_custom_call.1} parent=27 // pred_region
        %s210 = smul.u32 8, %s12
        %p211 = scmp.lt.s32.totalorder %s210, 15
        %s212 = scalar_select %p211, %s210, 15
        %s213 = smul.addr %s212, 8
        %s214 = scalar_lea.vmem %s0, %s213
        %s215 = smul.u32 8, %s12
      $region32: #{tpu_custom_call.1} parent=27 // pred_fallthru
        _
      // Predicated region
      $region33: #{tpu_custom_call.1} parent=27 // pred_check
        %p216 = pneg %p79
      $region34: #{tpu_custom_call.1} parent=27 // pred_check_branch
        %218 = sbr.rel (%p216) target = $region36
      $region35: #{tpu_custom_call.1} parent=27 // pred_region
        %s219 = smul.u32 8, %s12
        %p220 = scmp.lt.s32.totalorder %s219, 15
        %s221 = scalar_select %p220, %s219, 15
        %s222 = smul.addr %s221, 8
        %s223 = scalar_lea.vmem %s2, %s222
        %s224 = smul.u32 8, %s12
      $region36: #{tpu_custom_call.1} parent=27 // pred_fallthru
        _
      // Predicated region
      $region37: #{tpu_custom_call.1} parent=27 // pred_check
        %p225 = pneg %p126
      $region38: #{tpu_custom_call.1} parent=27 // pred_check_branch
        %227 = sbr.rel (%p225) target = $region40
      $region39: #{tpu_custom_call.1} parent=27 // pred_region
        %s228 = smul.u32 8, %s12
        %p229 = scmp.lt.s32.totalorder %s228, 15
        %s230 = scalar_select %p229, %s228, 15
        %s231 = smul.addr %s230, 8
        %s232 = scalar_lea.vmem %s4, %s231
        %s233 = smul.u32 8, %s12
      $region40: #{tpu_custom_call.1} parent=27 // pred_fallthru
        _
    $region28: #{tpu_custom_call.1} parent=5 // pred_fallthru
      _
    %p234 = scmp.le.s32.totalorder 1, %s12
    %p235 = scmp.lt.s32.totalorder %s12, 3
    %p236 = pnand %p234, %p235
    %p237 = pneg %p236
    // Predicated region
    $region41: #{tpu_custom_call.1} parent=5 // pred_check
      _
    $region42: #{tpu_custom_call.1} parent=5 // pred_check_branch
      %239 = sbr.rel (%p236) target = $region44
    $region43: #{tpu_custom_call.1} parent=5 // pred_region
      %s240 = ssub.s32 %s12, 1
      %s241 = smul.u32 8, %s17
      %p242 = scmp.lt.s32.totalorder %s241, 15
      %s243 = scalar_select %p242, %s241, 15
      %s244 = smul.addr %s243, 8
      %s245 = scalar_lea.vmem %s0, %s244
      %p246 = pneg %p38
      %p247 = pneg %p35
      %p248 = pneg %p59
      %p249 = pneg %p56
      %s250 = smul.u32 8, %s17
      %p251 = scmp.lt.s32.totalorder %s250, 15
      %s252 = scalar_select %p251, %s250, 15
      %s253 = smul.addr %s252, 8
      %s254 = scalar_lea.vmem %s2, %s253
      %p255 = pneg %p85
      %p256 = pneg %p82
      %p257 = pneg %p106
      %p258 = pneg %p103
      %s259 = smul.u32 8, %s17
      %p260 = scmp.lt.s32.totalorder %s259, 15
      %s261 = scalar_select %p260, %s259, 15
      %s262 = smul.addr %s261, 8
      %s263 = scalar_lea.vmem %s4, %s262
      %p264 = pneg %p132
      %p265 = pneg %p129
      %p266 = pneg %p153
      %p267 = pneg %p150
      %p268 = pneg %p179
      %p269 = pneg %p176
      %s270 = smul.u32 8, %s17
      %p271 = scmp.lt.s32.totalorder %s270, 15
      %s272 = scalar_select %p271, %s270, 15
      %s273 = smul.addr %s272, 8
      %s274 = scalar_lea.vmem %s6, %s273
      %s275 = smul.u32 8, %s17
      %p276 = scmp.lt.s32.totalorder %s275, 15
      %s277 = scalar_select %p276, %s275, 15
      %s278 = smul.addr %s277, 8
      %s279 = scalar_lea.vmem %s0, %s278
      %s280 = smul.u32 8, %s17
      %s281 = smul.u32 8, %s17
      %p282 = scmp.lt.s32.totalorder %s281, 15
      %s283 = scalar_select %p282, %s281, 15
      %s284 = smul.addr %s283, 8
      %s285 = scalar_lea.vmem %s2, %s284
      %s286 = smul.u32 8, %s17
      %s287 = smul.u32 8, %s17
      %p288 = scmp.lt.s32.totalorder %s287, 15
      %s289 = scalar_select %p288, %s287, 15
      %s290 = smul.addr %s289, 8
      %s291 = scalar_lea.vmem %s4, %s290
      %s292 = smul.u32 8, %s17
      %s293 = smul.u32 8, %s17
      %p294 = scmp.lt.s32.totalorder %s293, 15
      %s295 = scalar_select %p294, %s293, 15
      %s296 = smul.addr %s295, 8
      %s297 = scalar_lea.vmem %s6, %s296
      %s298 = smul.u32 8, %s17
      %v299 = vld [vmem:[%s279] sm:$0xff]
      %v300 = vld [vmem:[%s279 + $0x8] sm:$0xff]
      %v301 = vld [vmem:[%s279 + $0x10] sm:$0xff]
      %v302 = vld [vmem:[%s279 + $0x18] sm:$0xff]
      %v303 = vld [vmem:[%s279 + $0x20] sm:$0xff]
      %v304 = vld [vmem:[%s279 + $0x28] sm:$0xff]
      %v305 = vld [vmem:[%s279 + $0x30] sm:$0xff]
      %v306 = vld [vmem:[%s279 + $0x38] sm:$0xff]
      %v307 = vld [vmem:[%s1] sm:$0xff]
      %v308 = vld [vmem:[%s1 + $0x8] sm:$0xff]
      %v309 = vld [vmem:[%s1 + $0x10] sm:$0xff]
      %v310 = vld [vmem:[%s1 + $0x18] sm:$0xff]
      %v311 = vld [vmem:[%s1 + $0x20] sm:$0xff]
      %v312 = vld [vmem:[%s1 + $0x28] sm:$0xff]
      %v313 = vld [vmem:[%s1 + $0x30] sm:$0xff]
      %v314 = vld [vmem:[%s1 + $0x38] sm:$0xff]
      %v315 = vld [vmem:[%s1 + $0x40] sm:$0xff]
      %v316 = vld [vmem:[%s1 + $0x48] sm:$0xff]
      %v317 = vld [vmem:[%s1 + $0x50] sm:$0xff]
      %v318 = vld [vmem:[%s1 + $0x58] sm:$0xff]
      %v319 = vld [vmem:[%s1 + $0x60] sm:$0xff]
      %v320 = vld [vmem:[%s1 + $0x68] sm:$0xff]
      %v321 = vld [vmem:[%s1 + $0x70] sm:$0xff]
      %v322 = vld [vmem:[%s1 + $0x78] sm:$0xff]
      %323 = vmatprep.subr.mxu0 0.0
      %324 = vmatpush1.msra.mxu0 %v307
      %325 = vmatprep.subr.mxu0 0.0
      %326 = vmatpush1.msra.mxu0 %v308
      %327 = vmatprep.subr.mxu0 0.0
      %328 = vmatpush1.msra.mxu0 %v309
      %329 = vmatprep.subr.mxu0 0.0
      %330 = vmatpush1.msra.mxu0 %v310
      %331 = vmatprep.subr.mxu0 0.0
      %332 = vmatpush1.msra.mxu0 %v311
      %333 = vmatprep.subr.mxu0 0.0
      %334 = vmatpush1.msra.mxu0 %v312
      %335 = vmatprep.subr.mxu0 0.0
      %336 = vmatpush1.msra.mxu0 %v313
      %337 = vmatprep.subr.mxu0 0.0
      %338 = vmatpush1.msra.mxu0 %v314
      %339 = vmatprep.subr.mxu0 0.0
      %340 = vmatpush1.msra.mxu0 %v315
      %341 = vmatprep.subr.mxu0 0.0
      %342 = vmatpush1.msra.mxu0 %v316
      %343 = vmatprep.subr.mxu0 0.0
      %344 = vmatpush1.msra.mxu0 %v317
      %345 = vmatprep.subr.mxu0 0.0
      %346 = vmatpush1.msra.mxu0 %v318
      %347 = vmatprep.subr.mxu0 0.0
      %348 = vmatpush1.msra.mxu0 %v319
      %349 = vmatprep.subr.mxu0 0.0
      %350 = vmatpush1.msra.mxu0 %v320
      %351 = vmatprep.subr.mxu0 0.0
      %352 = vmatpush1.msra.mxu0 %v321
      %353 = vmatprep.subr.mxu0 0.0
      %354 = vmatpush1.msra.mxu0 %v322
      %355 = vmatprep.subr.mxu0 0.0
      %356 = vmatpush1.msra.mxu0 0.0
      %357 = vmatprep.subr.mxu0 0.0
      %358 = vmatpush1.msra.mxu0 0.0
      %359 = vmatprep.subr.mxu0 0.0
      %360 = vmatpush1.msra.mxu0 0.0
      %361 = vmatprep.subr.mxu0 0.0
      %362 = vmatpush1.msra.mxu0 0.0
      %363 = vmatprep.subr.mxu0 0.0
      %364 = vmatpush1.msra.mxu0 0.0
      %365 = vmatprep.subr.mxu0 0.0
      %366 = vmatpush1.msra.mxu0 0.0
      %367 = vmatprep.subr.mxu0 0.0
      %368 = vmatpush1.msra.mxu0 0.0
      %369 = vmatprep.subr.mxu0 0.0
      %370 = vmatpush1.msra.mxu0 0.0
      %371 = vmatprep.subr.mxu0 0.0
      %372 = vmatpush1.msra.mxu0 0.0
      %373 = vmatprep.subr.mxu0 0.0
      %374 = vmatpush1.msra.mxu0 0.0
      %375 = vmatprep.subr.mxu0 0.0
      %376 = vmatpush1.msra.mxu0 0.0
      %377 = vmatprep.subr.mxu0 0.0
      %378 = vmatpush1.msra.mxu0 0.0
      %379 = vmatprep.subr.mxu0 0.0
      %380 = vmatpush1.msra.mxu0 0.0
      %381 = vmatprep.subr.mxu0 0.0
      %382 = vmatpush1.msra.mxu0 0.0
      %383 = vmatprep.subr.mxu0 0.0
      %384 = vmatpush1.msra.mxu0 0.0
      %385 = vmatprep.subr.mxu0 0.0
      %386 = vmatpush1.msra.mxu0 0.0
      %387 = vmatprep.mubr.f32.mxu0 0.0
      %388 = vmatmul.mubr.f32.gmra.mrb[0].mxu0 %v299
      %v389 = vpop.f32.mrb[0].mxu0
      %v390 = vadd.f32 0.0, %v389
      %v391 = vpop.f32.mrb[0].mxu0
      %392 = vmatprep.mubr.f32.mxu0 0.0
      %393 = vmatmul.mubr.f32.gmra.mrb[0].mxu0 %v300
      %v394 = vpop.f32.mrb[0].mxu0
      %v395 = vadd.f32 0.0, %v394
      %v396 = vpop.f32.mrb[0].mxu0
      %397 = vmatprep.mubr.f32.mxu0 0.0
      %398 = vmatmul.mubr.f32.gmra.mrb[0].mxu0 %v301
      %v399 = vpop.f32.mrb[0].mxu0
      %v400 = vadd.f32 0.0, %v399
      %v401 = vpop.f32.mrb[0].mxu0
      %402 = vmatprep.mubr.f32.mxu0 0.0
      %403 = vmatmul.mubr.f32.gmra.mrb[0].mxu0 %v302
      %v404 = vpop.f32.mrb[0].mxu0
      %v405 = vadd.f32 0.0, %v404
      %v406 = vpop.f32.mrb[0].mxu0
      %407 = vmatprep.mubr.f32.mxu0 0.0
      %408 = vmatmul.mubr.f32.gmra.mrb[0].mxu0 %v303
      %v409 = vpop.f32.mrb[0].mxu0
      %v410 = vadd.f32 0.0, %v409
      %v411 = vpop.f32.mrb[0].mxu0
      %412 = vmatprep.mubr.f32.mxu0 0.0
      %413 = vmatmul.mubr.f32.gmra.mrb[0].mxu0 %v304
      %v414 = vpop.f32.mrb[0].mxu0
      %v415 = vadd.f32 0.0, %v414
      %v416 = vpop.f32.mrb[0].mxu0
      %417 = vmatprep.mubr.f32.mxu0 0.0
      %418 = vmatmul.mubr.f32.gmra.mrb[0].mxu0 %v305
      %v419 = vpop.f32.mrb[0].mxu0
      %v420 = vadd.f32 0.0, %v419
      %v421 = vpop.f32.mrb[0].mxu0
      %422 = vmatprep.mubr.f32.mxu0 0.0
      %423 = vmatmul.mubr.f32.gmra.mrb[0].mxu0 %v306
      %v424 = vpop.f32.mrb[0].mxu0
      %v425 = vadd.f32 0.0, %v424
      %v426 = vpop.f32.mrb[0].mxu0
      %427 = vdwg.mxu0
      %v428 = vld [vmem:[%s291] sm:$0xff]
      %v429 = vld [vmem:[%s291 + $0x8] sm:$0xff]
      %v430 = vld [vmem:[%s291 + $0x10] sm:$0xff]
      %v431 = vld [vmem:[%s291 + $0x18] sm:$0xff]
      %v432 = vld [vmem:[%s291 + $0x20] sm:$0xff]
      %v433 = vld [vmem:[%s291 + $0x28] sm:$0xff]
      %v434 = vld [vmem:[%s291 + $0x30] sm:$0xff]
      %v435 = vld [vmem:[%s291 + $0x38] sm:$0xff]
      %v436 = vld [vmem:[%s5] sm:$0x1]
      %438 = vset.pattern.permute.xlu0 0
      %439 = vperm.xlu0 %438, %v428
      %v440 = vpop.permute.xlu0 %439
      %443 = vset.pattern.permute.xlu0 0
      %444 = vperm.xlu0 %443, %v429
      %v445 = vpop.permute.xlu0 %444
      %448 = vset.pattern.permute.xlu0 0
      %449 = vperm.xlu0 %448, %v430
      %v450 = vpop.permute.xlu0 %449
      %453 = vset.pattern.permute.xlu0 0
      %454 = vperm.xlu0 %453, %v431
      %v455 = vpop.permute.xlu0 %454
      %458 = vset.pattern.permute.xlu0 0
      %459 = vperm.xlu0 %458, %v432
      %v460 = vpop.permute.xlu0 %459
      %463 = vset.pattern.permute.xlu0 0
      %464 = vperm.xlu0 %463, %v433
      %v465 = vpop.permute.xlu0 %464
      %468 = vset.pattern.permute.xlu0 0
      %469 = vperm.xlu0 %468, %v434
      %v470 = vpop.permute.xlu0 %469
      %473 = vset.pattern.permute.xlu0 0
      %474 = vperm.xlu0 %473, %v435
      %v475 = vpop.permute.xlu0 %474
      %v477 = vmul.f32 %v390, %v440
      %v478 = vmul.f32 %v395, %v445
      %v479 = vmul.f32 %v400, %v450
      %v480 = vmul.f32 %v405, %v455
      %v481 = vmul.f32 %v410, %v460
      %v482 = vmul.f32 %v415, %v465
      %v483 = vmul.f32 %v420, %v470
      %v484 = vmul.f32 %v425, %v475
      %v486 = vlaneseq
      %v487 = vshrl.u32 %v486, 7
      %v488 = vsub.s32 0, %v487
      %v489 = vrot.slane %v436, %v488
      %v491 = vmul.f32 %v477, %v489
      %v492 = vmul.f32 %v478, %v489
      %v493 = vmul.f32 %v479, %v489
      %v494 = vmul.f32 %v480, %v489
      %v495 = vmul.f32 %v481, %v489
      %v496 = vmul.f32 %v482, %v489
      %v497 = vmul.f32 %v483, %v489
      %v498 = vmul.f32 %v484, %v489
      %v499 = vld [vmem:[%s285] sm:$0xff]
      %v500 = vld [vmem:[%s285 + $0x8] sm:$0xff]
      %v501 = vld [vmem:[%s285 + $0x10] sm:$0xff]
      %v502 = vld [vmem:[%s285 + $0x18] sm:$0xff]
      %v503 = vld [vmem:[%s285 + $0x20] sm:$0xff]
      %v504 = vld [vmem:[%s285 + $0x28] sm:$0xff]
      %v505 = vld [vmem:[%s285 + $0x30] sm:$0xff]
      %v506 = vld [vmem:[%s285 + $0x38] sm:$0xff]
      %v507 = vld [vmem:[%s3] sm:$0x1]
      %508 = vset.pattern.permute.xlu0 0
      %509 = vperm.xlu0 %508, %v499
      %v510 = vpop.permute.xlu0 %509
      %511 = vset.pattern.permute.xlu0 0
      %512 = vperm.xlu0 %511, %v500
      %v513 = vpop.permute.xlu0 %512
      %514 = vset.pattern.permute.xlu0 0
      %515 = vperm.xlu0 %514, %v501
      %v516 = vpop.permute.xlu0 %515
      %517 = vset.pattern.permute.xlu0 0
      %518 = vperm.xlu0 %517, %v502
      %v519 = vpop.permute.xlu0 %518
      %520 = vset.pattern.permute.xlu0 0
      %521 = vperm.xlu0 %520, %v503
      %v522 = vpop.permute.xlu0 %521
      %523 = vset.pattern.permute.xlu0 0
      %524 = vperm.xlu0 %523, %v504
      %v525 = vpop.permute.xlu0 %524
      %526 = vset.pattern.permute.xlu0 0
      %527 = vperm.xlu0 %526, %v505
      %v528 = vpop.permute.xlu0 %527
      %529 = vset.pattern.permute.xlu0 0
      %530 = vperm.xlu0 %529, %v506
      %v531 = vpop.permute.xlu0 %530
      %v532 = vlaneseq
      %v533 = vshrl.u32 %v532, 7
      %v534 = vsub.s32 0, %v533
      %v535 = vrot.slane %v507, %v534
      %vm536 = vcmp.eq.s32.totalorder %v510, %v535
      %vm537 = vcmp.eq.s32.totalorder %v513, %v535
      %vm538 = vcmp.eq.s32.totalorder %v516, %v535
      %vm539 = vcmp.eq.s32.totalorder %v519, %v535
      %vm540 = vcmp.eq.s32.totalorder %v522, %v535
      %vm541 = vcmp.eq.s32.totalorder %v525, %v535
      %vm542 = vcmp.eq.s32.totalorder %v528, %v535
      %vm543 = vcmp.eq.s32.totalorder %v531, %v535
      %vm544 = vcmp.ge.s32.totalorder %v507, 0
      %v545 = vlaneseq
      %v546 = vand.u32 %v545, 127
      %s547 = smul.u32 %s17, 64
      %v548 = vlaneseq
      %v549 = vshrl.u32 %v548, 7
      %v550 = vadd.s32 %v549, 8
      %v551 = vadd.s32 %v549, 16
      %v552 = vadd.s32 %v549, 24
      %v553 = vadd.s32 %v549, 32
      %v554 = vadd.s32 %v549, 40
      %v555 = vadd.s32 %v549, 48
      %v556 = vadd.s32 %v549, 56
      %v557 = vstv %s547
      %v558 = vadd.s32 %v557, %v549
      %v559 = vadd.s32 %v557, %v550
      %v560 = vadd.s32 %v557, %v551
      %v561 = vadd.s32 %v557, %v552
      %v562 = vadd.s32 %v557, %v553
      %v563 = vadd.s32 %v557, %v554
      %v564 = vadd.s32 %v557, %v555
      %v565 = vadd.s32 %v557, %v556
      %vm566 = vcmp.ne.s32.totalorder %v546, %v558
      %vm567 = vcmp.ne.s32.totalorder %v546, %v559
      %vm568 = vcmp.ne.s32.totalorder %v546, %v560
      %vm569 = vcmp.ne.s32.totalorder %v546, %v561
      %vm570 = vcmp.ne.s32.totalorder %v546, %v562
      %vm571 = vcmp.ne.s32.totalorder %v546, %v563
      %vm572 = vcmp.ne.s32.totalorder %v546, %v564
      %vm573 = vcmp.ne.s32.totalorder %v546, %v565
      %vm574 = vmxor %vm536, 1
      %vm575 = vmxor %vm537, 1
      %vm576 = vmxor %vm538, 1
      %vm577 = vmxor %vm539, 1
      %vm578 = vmxor %vm540, 1
      %vm579 = vmxor %vm541, 1
      %vm580 = vmxor %vm542, 1
      %vm581 = vmxor %vm543, 1
      %v582 = vsel %vm544, 1, 0
      %v583 = vlaneseq
      %v584 = vshrl.u32 %v583, 7
      %v585 = vsub.s32 0, %v584
      %v586 = vrot.slane %v582, %v585
      %vm587 = vcmp.eq.s32.totalorder %v586, 1
      %vm588 = vmand %vm574, %vm587
      %vm589 = vmand %vm575, %vm587
      %vm590 = vmand %vm576, %vm587
      %vm591 = vmand %vm577, %vm587
      %vm592 = vmand %vm578, %vm587
      %vm593 = vmand %vm579, %vm587
      %vm594 = vmand %vm580, %vm587
      %vm595 = vmand %vm581, %vm587
      %vm596 = vmand %vm536, %vm587
      %vm597 = vmand %vm537, %vm587
      %vm598 = vmand %vm538, %vm587
      %vm599 = vmand %vm539, %vm587
      %vm600 = vmand %vm540, %vm587
      %vm601 = vmand %vm541, %vm587
      %vm602 = vmand %vm542, %vm587
      %vm603 = vmand %vm543, %vm587
      %vm604 = vcmp.lt.f32.partialorder %v491, 0.99999
      %vm605 = vcmp.lt.f32.partialorder %v492, 0.99999
      %vm606 = vcmp.lt.f32.partialorder %v493, 0.99999
      %vm607 = vcmp.lt.f32.partialorder %v494, 0.99999
      %vm608 = vcmp.lt.f32.partialorder %v495, 0.99999
      %vm609 = vcmp.lt.f32.partialorder %v496, 0.99999
      %vm610 = vcmp.lt.f32.partialorder %v497, 0.99999
      %vm611 = vcmp.lt.f32.partialorder %v498, 0.99999
      %vm612 = vmand %vm566, %vm604
      %vm613 = vmand %vm567, %vm605
      %vm614 = vmand %vm568, %vm606
      %vm615 = vmand %vm569, %vm607
      %vm616 = vmand %vm570, %vm608
      %vm617 = vmand %vm571, %vm609
      %vm618 = vmand %vm572, %vm610
      %vm619 = vmand %vm573, %vm611
      %vm620 = vmand %vm596, %vm612
      %vm621 = vmand %vm597, %vm613
      %vm622 = vmand %vm598, %vm614
      %vm623 = vmand %vm599, %vm615
      %vm624 = vmand %vm600, %vm616
      %vm625 = vmand %vm601, %vm617
      %vm626 = vmand %vm602, %vm618
      %vm627 = vmand %vm603, %vm619
      %v628 = vsel %vm588, %v491, -1e+30
      %v629 = vsel %vm589, %v492, -1e+30
      %v630 = vsel %vm590, %v493, -1e+30
      %v631 = vsel %vm591, %v494, -1e+30
      %v632 = vsel %vm592, %v495, -1e+30
      %v633 = vsel %vm593, %v496, -1e+30
      %v634 = vsel %vm594, %v497, -1e+30
      %v635 = vsel %vm595, %v498, -1e+30
      %636 = vmax.xlane.f32.xlu0 %v628
      %v637 = vpop.xlane.xlu0 %636
      %638 = vmax.xlane.f32.xlu0 %v629
      %v639 = vpop.xlane.xlu0 %638
      %640 = vmax.xlane.f32.xlu0 %v630
      %v641 = vpop.xlane.xlu0 %640
      %642 = vmax.xlane.f32.xlu0 %v631
      %v643 = vpop.xlane.xlu0 %642
      %644 = vmax.xlane.f32.xlu0 %v632
      %v645 = vpop.xlane.xlu0 %644
      %646 = vmax.xlane.f32.xlu0 %v633
      %v647 = vpop.xlane.xlu0 %646
      %648 = vmax.xlane.f32.xlu0 %v634
      %v649 = vpop.xlane.xlu0 %648
      %650 = vmax.xlane.f32.xlu0 %v635
      %v651 = vpop.xlane.xlu0 %650
      %v652 = vsel %vm620, %v491, 1e+30
      %v653 = vsel %vm621, %v492, 1e+30
      %v654 = vsel %vm622, %v493, 1e+30
      %v655 = vsel %vm623, %v494, 1e+30
      %v656 = vsel %vm624, %v495, 1e+30
      %v657 = vsel %vm625, %v496, 1e+30
      %v658 = vsel %vm626, %v497, 1e+30
      %v659 = vsel %vm627, %v498, 1e+30
      %660 = vmin.xlane.f32.xlu0 %v652
      %v661 = vpop.xlane.xlu0 %660
      %662 = vmin.xlane.f32.xlu0 %v653
      %v663 = vpop.xlane.xlu0 %662
      %664 = vmin.xlane.f32.xlu0 %v654
      %v665 = vpop.xlane.xlu0 %664
      %666 = vmin.xlane.f32.xlu0 %v655
      %v667 = vpop.xlane.xlu0 %666
      %668 = vmin.xlane.f32.xlu0 %v656
      %v669 = vpop.xlane.xlu0 %668
      %670 = vmin.xlane.f32.xlu0 %v657
      %v671 = vpop.xlane.xlu0 %670
      %672 = vmin.xlane.f32.xlu0 %v658
      %v673 = vpop.xlane.xlu0 %672
      %674 = vmin.xlane.f32.xlu0 %v659
      %v675 = vpop.xlane.xlu0 %674
      %v676 = vsub.f32 %v491, 0.5
      %v677 = vsub.f32 %v492, 0.5
      %v678 = vsub.f32 %v493, 0.5
      %v679 = vsub.f32 %v494, 0.5
      %v680 = vsub.f32 %v495, 0.5
      %v681 = vsub.f32 %v496, 0.5
      %v682 = vsub.f32 %v497, 0.5
      %v683 = vsub.f32 %v498, 0.5
      %v684 = vadd.f32 %v637, -0.4
      %v685 = vadd.f32 %v639, -0.4
      %v686 = vadd.f32 %v641, -0.4
      %v687 = vadd.f32 %v643, -0.4
      %v688 = vadd.f32 %v645, -0.4
      %v689 = vadd.f32 %v647, -0.4
      %v690 = vadd.f32 %v649, -0.4
      %v691 = vadd.f32 %v651, -0.4
      %v692 = vsub.f32 %v661, 0.6
      %v693 = vsub.f32 %v663, 0.6
      %v694 = vsub.f32 %v665, 0.6
      %v695 = vsub.f32 %v667, 0.6
      %v696 = vsub.f32 %v669, 0.6
      %v697 = vsub.f32 %v671, 0.6
      %v698 = vsub.f32 %v673, 0.6
      %v699 = vsub.f32 %v675, 0.6
      %vm700 = vcmp.lt.f32.partialorder %v676, %v684
      %vm701 = vcmp.lt.f32.partialorder %v677, %v685
      %vm702 = vcmp.lt.f32.partialorder %v678, %v686
      %vm703 = vcmp.lt.f32.partialorder %v679, %v687
      %vm704 = vcmp.lt.f32.partialorder %v680, %v688
      %vm705 = vcmp.lt.f32.partialorder %v681, %v689
      %vm706 = vcmp.lt.f32.partialorder %v682, %v690
      %vm707 = vcmp.lt.f32.partialorder %v683, %v691
      %vm708 = vmand %vm620, %vm700
      %vm709 = vmand %vm621, %vm701
      %vm710 = vmand %vm622, %vm702
      %vm711 = vmand %vm623, %vm703
      %vm712 = vmand %vm624, %vm704
      %vm713 = vmand %vm625, %vm705
      %vm714 = vmand %vm626, %vm706
      %vm715 = vmand %vm627, %vm707
      %vm716 = vcmp.gt.f32.partialorder %v676, %v692
      %vm717 = vcmp.gt.f32.partialorder %v677, %v693
      %vm718 = vcmp.gt.f32.partialorder %v678, %v694
      %vm719 = vcmp.gt.f32.partialorder %v679, %v695
      %vm720 = vcmp.gt.f32.partialorder %v680, %v696
      %vm721 = vcmp.gt.f32.partialorder %v681, %v697
      %vm722 = vcmp.gt.f32.partialorder %v682, %v698
      %vm723 = vcmp.gt.f32.partialorder %v683, %v699
      %vm724 = vmand %vm588, %vm716
      %vm725 = vmand %vm589, %vm717
      %vm726 = vmand %vm590, %vm718
      %vm727 = vmand %vm591, %vm719
      %vm728 = vmand %vm592, %vm720
      %vm729 = vmand %vm593, %vm721
      %vm730 = vmand %vm594, %vm722
      %vm731 = vmand %vm595, %vm723
      %v732 = vmul.f32 %v676, -2.88539
      %v733 = vmul.f32 %v677, -2.88539
      %v734 = vmul.f32 %v678, -2.88539
      %v735 = vmul.f32 %v679, -2.88539
      %v736 = vmul.f32 %v680, -2.88539
      %v737 = vmul.f32 %v681, -2.88539
      %v738 = vmul.f32 %v682, -2.88539
      %v739 = vmul.f32 %v683, -2.88539
      %v740 = vpow.pop %v732
      %v741 = vpow.pop %v733
      %v742 = vpow.pop %v734
      %v743 = vpow.pop %v735
      %v744 = vpow.pop %v736
      %v745 = vpow.pop %v737
      %v746 = vpow.pop %v738
      %v747 = vpow.pop %v739
      %v748 = vsel %vm708, %v740, 0.0
      %v749 = vsel %vm709, %v741, 0.0
      %v750 = vsel %vm710, %v742, 0.0
      %v751 = vsel %vm711, %v743, 0.0
      %v752 = vsel %vm712, %v744, 0.0
      %v753 = vsel %vm713, %v745, 0.0
      %v754 = vsel %vm714, %v746, 0.0
      %v755 = vsel %vm715, %v747, 0.0
      %756 = vadd.xlane.f32.xlu0 %v748
      %v757 = vpop.xlane.xlu0 %756
      %758 = vadd.xlane.f32.xlu0 %v749
      %v759 = vpop.xlane.xlu0 %758
      %760 = vadd.xlane.f32.xlu0 %v750
      %v761 = vpop.xlane.xlu0 %760
      %762 = vadd.xlane.f32.xlu0 %v751
      %v763 = vpop.xlane.xlu0 %762
      %764 = vadd.xlane.f32.xlu0 %v752
      %v765 = vpop.xlane.xlu0 %764
      %766 = vadd.xlane.f32.xlu0 %v753
      %v767 = vpop.xlane.xlu0 %766
      %768 = vadd.xlane.f32.xlu0 %v754
      %v769 = vpop.xlane.xlu0 %768
      %770 = vadd.xlane.f32.xlu0 %v755
      %v771 = vpop.xlane.xlu0 %770
      %v772 = vmul.f32 %v676, 72.13475
      %v773 = vmul.f32 %v677, 72.13475
      %v774 = vmul.f32 %v678, 72.13475
      %v775 = vmul.f32 %v679, 72.13475
      %v776 = vmul.f32 %v680, 72.13475
      %v777 = vmul.f32 %v681, 72.13475
      %v778 = vmul.f32 %v682, 72.13475
      %v779 = vmul.f32 %v683, 72.13475
      %v780 = vpow.pop %v772
      %v781 = vpow.pop %v773
      %v782 = vpow.pop %v774
      %v783 = vpow.pop %v775
      %v784 = vpow.pop %v776
      %v785 = vpow.pop %v777
      %v786 = vpow.pop %v778
      %v787 = vpow.pop %v779
      %v788 = vsel %vm724, %v780, 0.0
      %v789 = vsel %vm725, %v781, 0.0
      %v790 = vsel %vm726, %v782, 0.0
      %v791 = vsel %vm727, %v783, 0.0
      %v792 = vsel %vm728, %v784, 0.0
      %v793 = vsel %vm729, %v785, 0.0
      %v794 = vsel %vm730, %v786, 0.0
      %v795 = vsel %vm731, %v787, 0.0
      %796 = vadd.xlane.f32.xlu0 %v788
      %v797 = vpop.xlane.xlu0 %796
      %798 = vadd.xlane.f32.xlu0 %v789
      %v799 = vpop.xlane.xlu0 %798
      %800 = vadd.xlane.f32.xlu0 %v790
      %v801 = vpop.xlane.xlu0 %800
      %802 = vadd.xlane.f32.xlu0 %v791
      %v803 = vpop.xlane.xlu0 %802
      %804 = vadd.xlane.f32.xlu0 %v792
      %v805 = vpop.xlane.xlu0 %804
      %806 = vadd.xlane.f32.xlu0 %v793
      %v807 = vpop.xlane.xlu0 %806
      %808 = vadd.xlane.f32.xlu0 %v794
      %v809 = vpop.xlane.xlu0 %808
      %810 = vadd.xlane.f32.xlu0 %v795
      %v811 = vpop.xlane.xlu0 %810
      %v812 = vadd.f32 %v757, 1.0
      %v813 = vadd.f32 %v759, 1.0
      %v814 = vadd.f32 %v761, 1.0
      %v815 = vadd.f32 %v763, 1.0
      %v816 = vadd.f32 %v765, 1.0
      %v817 = vadd.f32 %v767, 1.0
      %v818 = vadd.f32 %v769, 1.0
      %v819 = vadd.f32 %v771, 1.0
      %v820 = vlog2.pop %v812
      %v821 = vmul.f32 %v820, 0.6931472
      %v822 = vlog2.pop %v813
      %v823 = vmul.f32 %v822, 0.6931472
      %v824 = vlog2.pop %v814
      %v825 = vmul.f32 %v824, 0.6931472
      %v826 = vlog2.pop %v815
      %v827 = vmul.f32 %v826, 0.6931472
      %v828 = vlog2.pop %v816
      %v829 = vmul.f32 %v828, 0.6931472
      %v830 = vlog2.pop %v817
      %v831 = vmul.f32 %v830, 0.6931472
      %v832 = vlog2.pop %v818
      %v833 = vmul.f32 %v832, 0.6931472
      %v834 = vlog2.pop %v819
      %v835 = vmul.f32 %v834, 0.6931472
      %v836 = vmul.f32 %v821, 0.5
      %v837 = vmul.f32 %v823, 0.5
      %v838 = vmul.f32 %v825, 0.5
      %v839 = vmul.f32 %v827, 0.5
      %v840 = vmul.f32 %v829, 0.5
      %v841 = vmul.f32 %v831, 0.5
      %v842 = vmul.f32 %v833, 0.5
      %v843 = vmul.f32 %v835, 0.5
      %v844 = vadd.f32 %v797, 1.0
      %v845 = vadd.f32 %v799, 1.0
      %v846 = vadd.f32 %v801, 1.0
      %v847 = vadd.f32 %v803, 1.0
      %v848 = vadd.f32 %v805, 1.0
      %v849 = vadd.f32 %v807, 1.0
      %v850 = vadd.f32 %v809, 1.0
      %v851 = vadd.f32 %v811, 1.0
      %v852 = vlog2.pop %v844
      %v853 = vmul.f32 %v852, 0.6931472
      %v854 = vlog2.pop %v845
      %v855 = vmul.f32 %v854, 0.6931472
      %v856 = vlog2.pop %v846
      %v857 = vmul.f32 %v856, 0.6931472
      %v858 = vlog2.pop %v847
      %v859 = vmul.f32 %v858, 0.6931472
      %v860 = vlog2.pop %v848
      %v861 = vmul.f32 %v860, 0.6931472
      %v862 = vlog2.pop %v849
      %v863 = vmul.f32 %v862, 0.6931472
      %v864 = vlog2.pop %v850
      %v865 = vmul.f32 %v864, 0.6931472
      %v866 = vlog2.pop %v851
      %v867 = vmul.f32 %v866, 0.6931472
      %v868 = vmul.f32 %v853, 0.02
      %v869 = vmul.f32 %v855, 0.02
      %v870 = vmul.f32 %v857, 0.02
      %v871 = vmul.f32 %v859, 0.02
      %v872 = vmul.f32 %v861, 0.02
      %v873 = vmul.f32 %v863, 0.02
      %v874 = vmul.f32 %v865, 0.02
      %v875 = vmul.f32 %v867, 0.02
      %v876 = vadd.f32 %v836, %v868
      %v877 = vadd.f32 %v837, %v869
      %v878 = vadd.f32 %v838, %v870
      %v879 = vadd.f32 %v839, %v871
      %v880 = vadd.f32 %v840, %v872
      %v881 = vadd.f32 %v841, %v873
      %v882 = vadd.f32 %v842, %v874
      %v883 = vadd.f32 %v843, %v875
      %vm884 = vcmask 7168
      %885 = vst.msk [vmem:[%s297] sm:$0xff] %vm884, %v876
      %886 = vst.msk [vmem:[%s297 + $0x8] sm:$0xff] %vm884, %v877
      %887 = vst.msk [vmem:[%s297 + $0x10] sm:$0xff] %vm884, %v878
      %888 = vst.msk [vmem:[%s297 + $0x18] sm:$0xff] %vm884, %v879
      %889 = vst.msk [vmem:[%s297 + $0x20] sm:$0xff] %vm884, %v880
      %890 = vst.msk [vmem:[%s297 + $0x28] sm:$0xff] %vm884, %v881
      %891 = vst.msk [vmem:[%s297 + $0x30] sm:$0xff] %vm884, %v882
      %892 = vst.msk [vmem:[%s297 + $0x38] sm:$0xff] %vm884, %v883
      %s893 = smul.u32 8, %s17
      %p894 = scmp.lt.s32.totalorder %s893, 15
      %s895 = scalar_select %p894, %s893, 15
      %s896 = smul.addr %s895, 8
      %s897 = scalar_lea.vmem %s6, %s896
      // Predicated region
      $region45: #{tpu_custom_call.1} parent=43 // pred_check
        %p898 = pneg %p176
      $region46: #{tpu_custom_call.1} parent=43 // pred_check_branch
        %900 = sbr.rel (%p898) target = $region48
      $region47: #{tpu_custom_call.1} parent=43 // pred_region
        %s901 = smul.u32 8, %s17
      $region48: #{tpu_custom_call.1} parent=43 // pred_fallthru
        _
    $region44: #{tpu_custom_call.1} parent=5 // pred_fallthru
      _
    %p902 = scmp.le.s32.totalorder 2, %s12
    // Predicated region
    $region49: #{tpu_custom_call.1} parent=5 // pred_check
      %p903 = pneg %p902
    $region50: #{tpu_custom_call.1} parent=5 // pred_check_branch
      %905 = sbr.rel (%p903) target = $region52
    $region51: #{tpu_custom_call.1} parent=5 // pred_region
      %s906 = ssub.s32 %s12, 2
      // Predicated region
      $region53: #{tpu_custom_call.1} parent=51 // pred_check
        %p907 = pneg %p182
      $region54: #{tpu_custom_call.1} parent=51 // pred_check_branch
        %909 = sbr.rel (%p907) target = $region56
      $region55: #{tpu_custom_call.1} parent=51 // pred_region
        %s910 = smul.u32 8, %s18
        %p911 = scmp.lt.s32.totalorder %s910, 15
        %s912 = scalar_select %p911, %s910, 15
        %s913 = smul.addr %s912, 8
        %s914 = scalar_lea.vmem %s6, %s913
      $region56: #{tpu_custom_call.1} parent=51 // pred_fallthru
        _
    $region52: #{tpu_custom_call.1} parent=5 // pred_fallthru
      _
  $region6: #{tpu_custom_call.1} parent=0 // loop_footer
    %s16 = sadd.s32 1, %s12
  $region7: #{tpu_custom_call.1} parent=0 // loop_footer_branch
    %11 = sbr.rel target = $region3
  $region8: #{tpu_custom_call.1} parent=0 // loop_exit
    _

// kernel: tpu_custom_call.1
$region0: #{tpu_custom_call.1}
  #allocation0 [shape = 'u32[]', space=smem, size = 0x4, offset = 0x4, fixed_abs, tag = 'smem constant byte address 0x4 - core index']
  #allocation1 [shape = 'u32[144,128]{1,0:T(1,128)}', space=vmem, size = 0x12000, scoped, tag = 'internal scratch']
  %s0 = inlined_call_operand.vmem [shape: f32[128,128], index: 0, kind: input, shape index: {}]
  %s1 = inlined_call_operand.vmem [shape: f32[128,128], index: 1, kind: input, shape index: {}]
  %s2 = inlined_call_operand.vmem [shape: s32[128,1], index: 2, kind: input, shape index: {}]
  %s3 = inlined_call_operand.vmem [shape: s32[1,128], index: 3, kind: input, shape index: {}]
  %s4 = inlined_call_operand.vmem [shape: f32[128,1], index: 4, kind: input, shape index: {}]
  %s5 = inlined_call_operand.vmem [shape: f32[1,128], index: 5, kind: input, shape index: {}]
  %s6 = inlined_call_operand.vmem [shape: f32[128,1], index: 6, kind: output, shape index: {}]
  %s7 = sld [smem:[#allocation0]]
  $region57: #{tpu_custom_call.1} parent=0
    _
  %s9 = ssub.s32 1, %s7
  %s10 = scalar_select 0, %s9, %s7
  loop: start=0, step=1, limit=4
  $region2: #{tpu_custom_call.1} parent=0 // loop_pre_header
    _
  $region3: #{tpu_custom_call.1} parent=0 // loop_header
    %s12 = sphi 0, %s16
    %p13 = scmp.ge.s32.totalorder %s12, 4
    %s22 = sphi 0, %s24
    %s25 = sphi 0, %s22
    %s26 = sphi 0, %s25
    %s42 = sphi 0, %s26
    %s46 = sphi 0, %s46
    %s48 = sphi 0, %s46
    %s49 = sphi 0, %s48
    %s63 = sphi 0, %s49
    %s69 = sphi 0, %s71
    %s72 = sphi 0, %s69
    %s73 = sphi 0, %s72
    %s89 = sphi 0, %s73
    %s93 = sphi 0, %s93
    %s95 = sphi 0, %s93
    %s96 = sphi 0, %s95
    %s110 = sphi 0, %s96
    %s116 = sphi 0, %s118
    %s119 = sphi 0, %s116
    %s120 = sphi 0, %s119
    %s136 = sphi 0, %s120
    %s140 = sphi 0, %s140
    %s142 = sphi 0, %s140
    %s143 = sphi 0, %s142
    %s157 = sphi 0, %s143
    %s163 = sphi 0, %s165
    %s166 = sphi 0, %s163
    %s167 = sphi 0, %s166
    %s183 = sphi 0, %s167
  $region4: #{tpu_custom_call.1} parent=0 // loop_header_branch
    %15 = sbr.rel (%p13) target = $region8
  $region5: #{tpu_custom_call.1} parent=0 // loop_body
    %s17 = ssub.s32 %s12, 1
    %s18 = ssub.s32 %s12, 2
    %s19 = sadd.s32 %s12, 1
    %s20 = ssub.s32 %s12, %s19
    %p21 = scmp.eq.s32.totalorder %s20, 0
    %s23 = sadd.s32 %s22, 1
    %s24 = scalar_select %p21, %s22, %s23
    %p27 = pneg %p21
    %p28 = scmp.eq.s32.totalorder %s12, 1
    %p29 = por %p27, %p28
    %p30 = scmp.ne.s32.totalorder %s22, %s25
    %p31 = scmp.eq.s32.totalorder %s12, 0
    %p32 = por %p30, %p31
    %p33 = scmp.ne.s32.totalorder %s22, %s25
    %p34 = scmp.eq.s32.totalorder %s17, 1
    %p35 = por %p33, %p34
    %p36 = scmp.ne.s32.totalorder %s25, %s26
    %p37 = scmp.eq.s32.totalorder %s17, 0
    %p38 = por %p36, %p37
    %p39 = scmp.ne.s32.totalorder %s25, %s26
    %p40 = scmp.eq.s32.totalorder %s18, 1
    %p41 = por %p39, %p40
    %p43 = scmp.ne.s32.totalorder %s26, %s42
    %p44 = scmp.eq.s32.totalorder %s18, 0
    %p45 = por %p43, %p44
    %s47 = sadd.s32 %s46, 1
    %p50 = scmp.eq.s32.totalorder %s12, 1
    %p51 = scmp.ne.s32.totalorder %s46, %s48
    %p52 = scmp.eq.s32.totalorder %s12, 0
    %p53 = por %p51, %p52
    %p54 = scmp.ne.s32.totalorder %s46, %s48
    %p55 = scmp.eq.s32.totalorder %s17, 1
    %p56 = por %p54, %p55
    %p57 = scmp.ne.s32.totalorder %s48, %s49
    %p58 = scmp.eq.s32.totalorder %s17, 0
    %p59 = por %p57, %p58
    %p60 = scmp.ne.s32.totalorder %s48, %s49
    %p61 = scmp.eq.s32.totalorder %s18, 1
    %p62 = por %p60, %p61
    %p64 = scmp.ne.s32.totalorder %s49, %s63
    %p65 = scmp.eq.s32.totalorder %s18, 0
    %p66 = por %p64, %p65
    %s67 = ssub.s32 %s12, %s19
    %p68 = scmp.eq.s32.totalorder %s67, 0
    %s70 = sadd.s32 %s69, 1
    %s71 = scalar_select %p68, %s69, %s70
    %p74 = pneg %p68
    %p75 = scmp.eq.s32.totalorder %s12, 1
    %p76 = por %p74, %p75
    %p77 = scmp.ne.s32.totalorder %s69, %s72
    %p78 = scmp.eq.s32.totalorder %s12, 0
    %p79 = por %p77, %p78
    %p80 = scmp.ne.s32.totalorder %s69, %s72
    %p81 = scmp.eq.s32.totalorder %s17, 1
    %p82 = por %p80, %p81
    %p83 = scmp.ne.s32.totalorder %s72, %s73
    %p84 = scmp.eq.s32.totalorder %s17, 0
    %p85 = por %p83, %p84
    %p86 = scmp.ne.s32.totalorder %s72, %s73
    %p87 = scmp.eq.s32.totalorder %s18, 1
    %p88 = por %p86, %p87
    %p90 = scmp.ne.s32.totalorder %s73, %s89
    %p91 = scmp.eq.s32.totalorder %s18, 0
    %p92 = por %p90, %p91
    %s94 = sadd.s32 %s93, 1
    %p97 = scmp.eq.s32.totalorder %s12, 1
    %p98 = scmp.ne.s32.totalorder %s93, %s95
    %p99 = scmp.eq.s32.totalorder %s12, 0
    %p100 = por %p98, %p99
    %p101 = scmp.ne.s32.totalorder %s93, %s95
    %p102 = scmp.eq.s32.totalorder %s17, 1
    %p103 = por %p101, %p102
    %p104 = scmp.ne.s32.totalorder %s95, %s96
    %p105 = scmp.eq.s32.totalorder %s17, 0
    %p106 = por %p104, %p105
    %p107 = scmp.ne.s32.totalorder %s95, %s96
    %p108 = scmp.eq.s32.totalorder %s18, 1
    %p109 = por %p107, %p108
    %p111 = scmp.ne.s32.totalorder %s96, %s110
    %p112 = scmp.eq.s32.totalorder %s18, 0
    %p113 = por %p111, %p112
    %s114 = ssub.s32 %s12, %s19
    %p115 = scmp.eq.s32.totalorder %s114, 0
    %s117 = sadd.s32 %s116, 1
    %s118 = scalar_select %p115, %s116, %s117
    %p121 = pneg %p115
    %p122 = scmp.eq.s32.totalorder %s12, 1
    %p123 = por %p121, %p122
    %p124 = scmp.ne.s32.totalorder %s116, %s119
    %p125 = scmp.eq.s32.totalorder %s12, 0
    %p126 = por %p124, %p125
    %p127 = scmp.ne.s32.totalorder %s116, %s119
    %p128 = scmp.eq.s32.totalorder %s17, 1
    %p129 = por %p127, %p128
    %p130 = scmp.ne.s32.totalorder %s119, %s120
    %p131 = scmp.eq.s32.totalorder %s17, 0
    %p132 = por %p130, %p131
    %p133 = scmp.ne.s32.totalorder %s119, %s120
    %p134 = scmp.eq.s32.totalorder %s18, 1
    %p135 = por %p133, %p134
    %p137 = scmp.ne.s32.totalorder %s120, %s136
    %p138 = scmp.eq.s32.totalorder %s18, 0
    %p139 = por %p137, %p138
    %s141 = sadd.s32 %s140, 1
    %p144 = scmp.eq.s32.totalorder %s12, 1
    %p145 = scmp.ne.s32.totalorder %s140, %s142
    %p146 = scmp.eq.s32.totalorder %s12, 0
    %p147 = por %p145, %p146
    %p148 = scmp.ne.s32.totalorder %s140, %s142
    %p149 = scmp.eq.s32.totalorder %s17, 1
    %p150 = por %p148, %p149
    %p151 = scmp.ne.s32.totalorder %s142, %s143
    %p152 = scmp.eq.s32.totalorder %s17, 0
    %p153 = por %p151, %p152
    %p154 = scmp.ne.s32.totalorder %s142, %s143
    %p155 = scmp.eq.s32.totalorder %s18, 1
    %p156 = por %p154, %p155
    %p158 = scmp.ne.s32.totalorder %s143, %s157
    %p159 = scmp.eq.s32.totalorder %s18, 0
    %p160 = por %p158, %p159
    %s161 = ssub.s32 %s12, %s19
    %p162 = scmp.eq.s32.totalorder %s161, 0
    %s164 = sadd.s32 %s163, 1
    %s165 = scalar_select %p162, %s163, %s164
    %p168 = pneg %p162
    %p169 = scmp.eq.s32.totalorder %s12, 1
    %p170 = por %p168, %p169
    %p171 = scmp.ne.s32.totalorder %s163, %s166
    %p172 = scmp.eq.s32.totalorder %s12, 0
    %p173 = por %p171, %p172
    %p174 = scmp.ne.s32.totalorder %s163, %s166
    %p175 = scmp.eq.s32.totalorder %s17, 1
    %p176 = por %p174, %p175
    %p177 = scmp.ne.s32.totalorder %s166, %s167
    %p178 = scmp.eq.s32.totalorder %s17, 0
    %p179 = por %p177, %p178
    %p180 = scmp.ne.s32.totalorder %s166, %s167
    %p181 = scmp.eq.s32.totalorder %s18, 1
    %p182 = por %p180, %p181
    %p184 = scmp.ne.s32.totalorder %s167, %s183
    %p185 = scmp.eq.s32.totalorder %s18, 0
    %p186 = por %p184, %p185
    %p187 = scmp.le.s32.totalorder 1, %s12
    %p188 = scmp.lt.s32.totalorder %s12, 3
    %p189 = pnand %p187, %p188
    %p190 = pneg %p189
    // Predicated region
    $region9: #{tpu_custom_call.1} parent=5 // pred_check
      _
    $region10: #{tpu_custom_call.1} parent=5 // pred_check_branch
      %192 = sbr.rel (%p189) target = $region12
    $region11: #{tpu_custom_call.1} parent=5 // pred_region
      %s193 = ssub.s32 %s12, 1
      // Predicated region
      $region13: #{tpu_custom_call.1} parent=11 // pred_check
        %p194 = pneg %p59
      $region14: #{tpu_custom_call.1} parent=11 // pred_check_branch
        %196 = sbr.rel (%p194) target = $region16
      $region15: #{tpu_custom_call.1} parent=11 // pred_region
        _
      $region16: #{tpu_custom_call.1} parent=11 // pred_fallthru
        _
      // Predicated region
      $region17: #{tpu_custom_call.1} parent=11 // pred_check
        %p197 = pneg %p106
      $region18: #{tpu_custom_call.1} parent=11 // pred_check_branch
        %199 = sbr.rel (%p197) target = $region20
      $region19: #{tpu_custom_call.1} parent=11 // pred_region
        _
      $region20: #{tpu_custom_call.1} parent=11 // pred_fallthru
        _
      // Predicated region
      $region21: #{tpu_custom_call.1} parent=11 // pred_check
        %p200 = pneg %p153
      $region22: #{tpu_custom_call.1} parent=11 // pred_check_branch
        %202 = sbr.rel (%p200) target = $region24
      $region23: #{tpu_custom_call.1} parent=11 // pred_region
        _
      $region24: #{tpu_custom_call.1} parent=11 // pred_fallthru
        _
    $region12: #{tpu_custom_call.1} parent=5 // pred_fallthru
      _
    %p203 = scmp.lt.s32.totalorder %s12, 2
    // Predicated region
    $region25: #{tpu_custom_call.1} parent=5 // pred_check
      %p204 = pneg %p203
    $region26: #{tpu_custom_call.1} parent=5 // pred_check_branch
      %206 = sbr.rel (%p204) target = $region28
    $region27: #{tpu_custom_call.1} parent=5 // pred_region
      // Predicated region
      $region29: #{tpu_custom_call.1} parent=27 // pred_check
        %p207 = pneg %p32
      $region30: #{tpu_custom_call.1} parent=27 // pred_check_branch
        %209 = sbr.rel (%p207) target = $region32
      $region31: #{tpu_custom_call.1} parent=27 // pred_region
        %s210 = smul.u32 8, %s12
        %p211 = scmp.lt.s32.totalorder %s210, 15
        %s212 = scalar_select %p211, %s210, 15
        %s213 = smul.addr %s212, 8
        %s214 = scalar_lea.vmem %s0, %s213
        %s215 = smul.u32 8, %s12
      $region32: #{tpu_custom_call.1} parent=27 // pred_fallthru
        _
      // Predicated region
      $region33: #{tpu_custom_call.1} parent=27 // pred_check
        %p216 = pneg %p79
      $region34: #{tpu_custom_call.1} parent=27 // pred_check_branch
        %218 = sbr.rel (%p216) target = $region36
      $region35: #{tpu_custom_call.1} parent=27 // pred_region
        %s219 = smul.u32 8, %s12
        %p220 = scmp.lt.s32.totalorder %s219, 15
        %s221 = scalar_select %p220, %s219, 15
        %s222 = smul.addr %s221, 8
        %s223 = scalar_lea.vmem %s2, %s222
        %s224 = smul.u32 8, %s12
      $region36: #{tpu_custom_call.1} parent=27 // pred_fallthru
        _
      // Predicated region
      $region37: #{tpu_custom_call.1} parent=27 // pred_check
        %p225 = pneg %p126
      $region38: #{tpu_custom_call.1} parent=27 // pred_check_branch
        %227 = sbr.rel (%p225) target = $region40
      $region39: #{tpu_custom_call.1} parent=27 // pred_region
        %s228 = smul.u32 8, %s12
        %p229 = scmp.lt.s32.totalorder %s228, 15
        %s230 = scalar_select %p229, %s228, 15
        %s231 = smul.addr %s230, 8
        %s232 = scalar_lea.vmem %s4, %s231
        %s233 = smul.u32 8, %s12
      $region40: #{tpu_custom_call.1} parent=27 // pred_fallthru
        _
    $region28: #{tpu_custom_call.1} parent=5 // pred_fallthru
      _
    %p234 = scmp.le.s32.totalorder 1, %s12
    %p235 = scmp.lt.s32.totalorder %s12, 3
    %p236 = pnand %p234, %p235
    %p237 = pneg %p236
    // Predicated region
    $region41: #{tpu_custom_call.1} parent=5 // pred_check
      _
    $region42: #{tpu_custom_call.1} parent=5 // pred_check_branch
      %239 = sbr.rel (%p236) target = $region44
    $region43: #{tpu_custom_call.1} parent=5 // pred_region
      %s240 = ssub.s32 %s12, 1
      %s241 = smul.u32 8, %s17
      %p242 = scmp.lt.s32.totalorder %s241, 15
      %s243 = scalar_select %p242, %s241, 15
      %s244 = smul.addr %s243, 8
      %s245 = scalar_lea.vmem %s0, %s244
      %p246 = pneg %p38
      %p247 = pneg %p35
      %p248 = pneg %p59
      %p249 = pneg %p56
      %s250 = smul.u32 8, %s17
      %p251 = scmp.lt.s32.totalorder %s250, 15
      %s252 = scalar_select %p251, %s250, 15
      %s253 = smul.addr %s252, 8
      %s254 = scalar_lea.vmem %s2, %s253
      %p255 = pneg %p85
      %p256 = pneg %p82
      %p257 = pneg %p106
      %p258 = pneg %p103
      %s259 = smul.u32 8, %s17
      %p260 = scmp.lt.s32.totalorder %s259, 15
      %s261 = scalar_select %p260, %s259, 15
      %s262 = smul.addr %s261, 8
      %s263 = scalar_lea.vmem %s4, %s262
      %p264 = pneg %p132
      %p265 = pneg %p129
      %p266 = pneg %p153
      %p267 = pneg %p150
      %p268 = pneg %p179
      %p269 = pneg %p176
      %s270 = smul.u32 8, %s17
      %p271 = scmp.lt.s32.totalorder %s270, 15
      %s272 = scalar_select %p271, %s270, 15
      %s273 = smul.addr %s272, 8
      %s274 = scalar_lea.vmem %s6, %s273
      %s275 = smul.u32 8, %s17
      %p276 = scmp.lt.s32.totalorder %s275, 15
      %s277 = scalar_select %p276, %s275, 15
      %s278 = smul.addr %s277, 8
      %s279 = scalar_lea.vmem %s0, %s278
      %s280 = smul.u32 8, %s17
      %s281 = smul.u32 8, %s17
      %p282 = scmp.lt.s32.totalorder %s281, 15
      %s283 = scalar_select %p282, %s281, 15
      %s284 = smul.addr %s283, 8
      %s285 = scalar_lea.vmem %s2, %s284
      %s286 = smul.u32 8, %s17
      %s287 = smul.u32 8, %s17
      %p288 = scmp.lt.s32.totalorder %s287, 15
      %s289 = scalar_select %p288, %s287, 15
      %s290 = smul.addr %s289, 8
      %s291 = scalar_lea.vmem %s4, %s290
      %s292 = smul.u32 8, %s17
      %s293 = smul.u32 8, %s17
      %p294 = scmp.lt.s32.totalorder %s293, 15
      %s295 = scalar_select %p294, %s293, 15
      %s296 = smul.addr %s295, 8
      %s297 = scalar_lea.vmem %s6, %s296
      %s298 = smul.u32 8, %s17
      %v299 = vld [vmem:[%s279] sm:$0xff]
      %v300 = vld [vmem:[%s279 + $0x8] sm:$0xff]
      %v301 = vld [vmem:[%s279 + $0x10] sm:$0xff]
      %v302 = vld [vmem:[%s279 + $0x18] sm:$0xff]
      %v303 = vld [vmem:[%s279 + $0x20] sm:$0xff]
      %v304 = vld [vmem:[%s279 + $0x28] sm:$0xff]
      %v305 = vld [vmem:[%s279 + $0x30] sm:$0xff]
      %v306 = vld [vmem:[%s279 + $0x38] sm:$0xff]
      %v307 = vld [vmem:[%s1] sm:$0xff]
      %v308 = vld [vmem:[%s1 + $0x8] sm:$0xff]
      %v309 = vld [vmem:[%s1 + $0x10] sm:$0xff]
      %v310 = vld [vmem:[%s1 + $0x18] sm:$0xff]
      %v311 = vld [vmem:[%s1 + $0x20] sm:$0xff]
      %v312 = vld [vmem:[%s1 + $0x28] sm:$0xff]
      %v313 = vld [vmem:[%s1 + $0x30] sm:$0xff]
      %v314 = vld [vmem:[%s1 + $0x38] sm:$0xff]
      %v315 = vld [vmem:[%s1 + $0x40] sm:$0xff]
      %v316 = vld [vmem:[%s1 + $0x48] sm:$0xff]
      %v317 = vld [vmem:[%s1 + $0x50] sm:$0xff]
      %v318 = vld [vmem:[%s1 + $0x58] sm:$0xff]
      %v319 = vld [vmem:[%s1 + $0x60] sm:$0xff]
      %v320 = vld [vmem:[%s1 + $0x68] sm:$0xff]
      %v321 = vld [vmem:[%s1 + $0x70] sm:$0xff]
      %v322 = vld [vmem:[%s1 + $0x78] sm:$0xff]
      %323 = vmatprep.subr.mxu0 0.0
      %324 = vmatpush1.msra.mxu0 %v307
      %325 = vmatprep.subr.mxu0 0.0
      %326 = vmatpush1.msra.mxu0 %v308
      %327 = vmatprep.subr.mxu0 0.0
      %328 = vmatpush1.msra.mxu0 %v309
      %329 = vmatprep.subr.mxu0 0.0
      %330 = vmatpush1.msra.mxu0 %v310
      %331 = vmatprep.subr.mxu0 0.0
      %332 = vmatpush1.msra.mxu0 %v311
      %333 = vmatprep.subr.mxu0 0.0
      %334 = vmatpush1.msra.mxu0 %v312
      %335 = vmatprep.subr.mxu0 0.0
      %336 = vmatpush1.msra.mxu0 %v313
      %337 = vmatprep.subr.mxu0 0.0
      %338 = vmatpush1.msra.mxu0 %v314
      %339 = vmatprep.subr.mxu0 0.0
      %340 = vmatpush1.msra.mxu0 %v315
      %341 = vmatprep.subr.mxu0 0.0
      %342 = vmatpush1.msra.mxu0 %v316
      %343 = vmatprep.subr.mxu0 0.0
      %344 = vmatpush1.msra.mxu0 %v317
      %345 = vmatprep.subr.mxu0 0.0
      %346 = vmatpush1.msra.mxu0 %v318
      %347 = vmatprep.subr.mxu0 0.0
      %348 = vmatpush1.msra.mxu0 %v319
      %349 = vmatprep.subr.mxu0 0.0
      %350 = vmatpush1.msra.mxu0 %v320
      %351 = vmatprep.subr.mxu0 0.0
      %352 = vmatpush1.msra.mxu0 %v321
      %353 = vmatprep.subr.mxu0 0.0
      %354 = vmatpush1.msra.mxu0 %v322
      %355 = vmatprep.subr.mxu0 0.0
      %356 = vmatpush1.msra.mxu0 0.0
      %357 = vmatprep.subr.mxu0 0.0
      %358 = vmatpush1.msra.mxu0 0.0
      %359 = vmatprep.subr.mxu0 0.0
      %360 = vmatpush1.msra.mxu0 0.0
      %361 = vmatprep.subr.mxu0 0.0
      %362 = vmatpush1.msra.mxu0 0.0
      %363 = vmatprep.subr.mxu0 0.0
      %364 = vmatpush1.msra.mxu0 0.0
      %365 = vmatprep.subr.mxu0 0.0
      %366 = vmatpush1.msra.mxu0 0.0
      %367 = vmatprep.subr.mxu0 0.0
      %368 = vmatpush1.msra.mxu0 0.0
      %369 = vmatprep.subr.mxu0 0.0
      %370 = vmatpush1.msra.mxu0 0.0
      %371 = vmatprep.subr.mxu0 0.0
      %372 = vmatpush1.msra.mxu0 0.0
      %373 = vmatprep.subr.mxu0 0.0
      %374 = vmatpush1.msra.mxu0 0.0
      %375 = vmatprep.subr.mxu0 0.0
      %376 = vmatpush1.msra.mxu0 0.0
      %377 = vmatprep.subr.mxu0 0.0
      %378 = vmatpush1.msra.mxu0 0.0
      %379 = vmatprep.subr.mxu0 0.0
      %380 = vmatpush1.msra.mxu0 0.0
      %381 = vmatprep.subr.mxu0 0.0
      %382 = vmatpush1.msra.mxu0 0.0
      %383 = vmatprep.subr.mxu0 0.0
      %384 = vmatpush1.msra.mxu0 0.0
      %385 = vmatprep.subr.mxu0 0.0
      %386 = vmatpush1.msra.mxu0 0.0
      %387 = vmatprep.mubr.f32.mxu0 0.0
      %388 = vmatmul.mubr.f32.gmra.mrb[0].mxu0 %v299
      %v389 = vpop.f32.mrb[0].mxu0
      %v390 = vadd.f32 0.0, %v389
      %v391 = vpop.f32.mrb[0].mxu0
      %392 = vmatprep.mubr.f32.mxu0 0.0
      %393 = vmatmul.mubr.f32.gmra.mrb[0].mxu0 %v300
      %v394 = vpop.f32.mrb[0].mxu0
      %v395 = vadd.f32 0.0, %v394
      %v396 = vpop.f32.mrb[0].mxu0
      %397 = vmatprep.mubr.f32.mxu0 0.0
      %398 = vmatmul.mubr.f32.gmra.mrb[0].mxu0 %v301
      %v399 = vpop.f32.mrb[0].mxu0
      %v400 = vadd.f32 0.0, %v399
      %v401 = vpop.f32.mrb[0].mxu0
      %402 = vmatprep.mubr.f32.mxu0 0.0
      %403 = vmatmul.mubr.f32.gmra.mrb[0].mxu0 %v302
      %v404 = vpop.f32.mrb[0].mxu0
      %v405 = vadd.f32 0.0, %v404
      %v406 = vpop.f32.mrb[0].mxu0
      %407 = vmatprep.mubr.f32.mxu0 0.0
      %408 = vmatmul.mubr.f32.gmra.mrb[0].mxu0 %v303
      %v409 = vpop.f32.mrb[0].mxu0
      %v410 = vadd.f32 0.0, %v409
      %v411 = vpop.f32.mrb[0].mxu0
      %412 = vmatprep.mubr.f32.mxu0 0.0
      %413 = vmatmul.mubr.f32.gmra.mrb[0].mxu0 %v304
      %v414 = vpop.f32.mrb[0].mxu0
      %v415 = vadd.f32 0.0, %v414
      %v416 = vpop.f32.mrb[0].mxu0
      %417 = vmatprep.mubr.f32.mxu0 0.0
      %418 = vmatmul.mubr.f32.gmra.mrb[0].mxu0 %v305
      %v419 = vpop.f32.mrb[0].mxu0
      %v420 = vadd.f32 0.0, %v419
      %v421 = vpop.f32.mrb[0].mxu0
      %422 = vmatprep.mubr.f32.mxu0 0.0
      %423 = vmatmul.mubr.f32.gmra.mrb[0].mxu0 %v306
      %v424 = vpop.f32.mrb[0].mxu0
      %v425 = vadd.f32 0.0, %v424
      %v426 = vpop.f32.mrb[0].mxu0
      %427 = vdwg.mxu0
      %v428 = vld [vmem:[%s291] sm:$0xff]
      %v429 = vld [vmem:[%s291 + $0x8] sm:$0xff]
      %v430 = vld [vmem:[%s291 + $0x10] sm:$0xff]
      %v431 = vld [vmem:[%s291 + $0x18] sm:$0xff]
      %v432 = vld [vmem:[%s291 + $0x20] sm:$0xff]
      %v433 = vld [vmem:[%s291 + $0x28] sm:$0xff]
      %v434 = vld [vmem:[%s291 + $0x30] sm:$0xff]
      %v435 = vld [vmem:[%s291 + $0x38] sm:$0xff]
      %v436 = vld [vmem:[%s5] sm:$0x1]
      %438 = vset.pattern.permute.xlu0 0
      %439 = vperm.xlu0 %438, %v428
      %v440 = vpop.permute.xlu0 %439
      %443 = vset.pattern.permute.xlu0 0
      %444 = vperm.xlu0 %443, %v429
      %v445 = vpop.permute.xlu0 %444
      %448 = vset.pattern.permute.xlu0 0
      %449 = vperm.xlu0 %448, %v430
      %v450 = vpop.permute.xlu0 %449
      %453 = vset.pattern.permute.xlu0 0
      %454 = vperm.xlu0 %453, %v431
      %v455 = vpop.permute.xlu0 %454
      %458 = vset.pattern.permute.xlu0 0
      %459 = vperm.xlu0 %458, %v432
      %v460 = vpop.permute.xlu0 %459
      %463 = vset.pattern.permute.xlu0 0
      %464 = vperm.xlu0 %463, %v433
      %v465 = vpop.permute.xlu0 %464
      %468 = vset.pattern.permute.xlu0 0
      %469 = vperm.xlu0 %468, %v434
      %v470 = vpop.permute.xlu0 %469
      %473 = vset.pattern.permute.xlu0 0
      %474 = vperm.xlu0 %473, %v435
      %v475 = vpop.permute.xlu0 %474
      %v477 = vmul.f32 %v390, %v440
      %v478 = vmul.f32 %v395, %v445
      %v479 = vmul.f32 %v400, %v450
      %v480 = vmul.f32 %v405, %v455
      %v481 = vmul.f32 %v410, %v460
      %v482 = vmul.f32 %v415, %v465
      %v483 = vmul.f32 %v420, %v470
      %v484 = vmul.f32 %v425, %v475
      %v486 = vlaneseq
      %v487 = vshrl.u32 %v486, 7
      %v488 = vsub.s32 0, %v487
      %v489 = vrot.slane %v436, %v488
      %v491 = vmul.f32 %v477, %v489
      %v492 = vmul.f32 %v478, %v489
      %v493 = vmul.f32 %v479, %v489
      %v494 = vmul.f32 %v480, %v489
      %v495 = vmul.f32 %v481, %v489
      %v496 = vmul.f32 %v482, %v489
      %v497 = vmul.f32 %v483, %v489
      %v498 = vmul.f32 %v484, %v489
      %v499 = vld [vmem:[%s285] sm:$0xff]
      %v500 = vld [vmem:[%s285 + $0x8] sm:$0xff]
      %v501 = vld [vmem:[%s285 + $0x10] sm:$0xff]
      %v502 = vld [vmem:[%s285 + $0x18] sm:$0xff]
      %v503 = vld [vmem:[%s285 + $0x20] sm:$0xff]
      %v504 = vld [vmem:[%s285 + $0x28] sm:$0xff]
      %v505 = vld [vmem:[%s285 + $0x30] sm:$0xff]
      %v506 = vld [vmem:[%s285 + $0x38] sm:$0xff]
      %v507 = vld [vmem:[%s3] sm:$0x1]
      %508 = vset.pattern.permute.xlu0 0
      %509 = vperm.xlu0 %508, %v499
      %v510 = vpop.permute.xlu0 %509
      %511 = vset.pattern.permute.xlu0 0
      %512 = vperm.xlu0 %511, %v500
      %v513 = vpop.permute.xlu0 %512
      %514 = vset.pattern.permute.xlu0 0
      %515 = vperm.xlu0 %514, %v501
      %v516 = vpop.permute.xlu0 %515
      %517 = vset.pattern.permute.xlu0 0
      %518 = vperm.xlu0 %517, %v502
      %v519 = vpop.permute.xlu0 %518
      %520 = vset.pattern.permute.xlu0 0
      %521 = vperm.xlu0 %520, %v503
      %v522 = vpop.permute.xlu0 %521
      %523 = vset.pattern.permute.xlu0 0
      %524 = vperm.xlu0 %523, %v504
      %v525 = vpop.permute.xlu0 %524
      %526 = vset.pattern.permute.xlu0 0
      %527 = vperm.xlu0 %526, %v505
      %v528 = vpop.permute.xlu0 %527
      %529 = vset.pattern.permute.xlu0 0
      %530 = vperm.xlu0 %529, %v506
      %v531 = vpop.permute.xlu0 %530
      %v532 = vlaneseq
      %v533 = vshrl.u32 %v532, 7
      %v534 = vsub.s32 0, %v533
      %v535 = vrot.slane %v507, %v534
      %vm536 = vcmp.eq.s32.totalorder %v510, %v535
      %vm537 = vcmp.eq.s32.totalorder %v513, %v535
      %vm538 = vcmp.eq.s32.totalorder %v516, %v535
      %vm539 = vcmp.eq.s32.totalorder %v519, %v535
      %vm540 = vcmp.eq.s32.totalorder %v522, %v535
      %vm541 = vcmp.eq.s32.totalorder %v525, %v535
      %vm542 = vcmp.eq.s32.totalorder %v528, %v535
      %vm543 = vcmp.eq.s32.totalorder %v531, %v535
      %vm544 = vcmp.ge.s32.totalorder %v507, 0
      %v545 = vlaneseq
      %v546 = vand.u32 %v545, 127
      %s547 = smul.u32 %s17, 64
      %v548 = vlaneseq
      %v549 = vshrl.u32 %v548, 7
      %v550 = vadd.s32 %v549, 8
      %v551 = vadd.s32 %v549, 16
      %v552 = vadd.s32 %v549, 24
      %v553 = vadd.s32 %v549, 32
      %v554 = vadd.s32 %v549, 40
      %v555 = vadd.s32 %v549, 48
      %v556 = vadd.s32 %v549, 56
      %v557 = vstv %s547
      %v558 = vadd.s32 %v557, %v549
      %v559 = vadd.s32 %v557, %v550
      %v560 = vadd.s32 %v557, %v551
      %v561 = vadd.s32 %v557, %v552
      %v562 = vadd.s32 %v557, %v553
      %v563 = vadd.s32 %v557, %v554
      %v564 = vadd.s32 %v557, %v555
      %v565 = vadd.s32 %v557, %v556
      %vm566 = vcmp.ne.s32.totalorder %v546, %v558
      %vm567 = vcmp.ne.s32.totalorder %v546, %v559
      %vm568 = vcmp.ne.s32.totalorder %v546, %v560
      %vm569 = vcmp.ne.s32.totalorder %v546, %v561
      %vm570 = vcmp.ne.s32.totalorder %v546, %v562
      %vm571 = vcmp.ne.s32.totalorder %v546, %v563
      %vm572 = vcmp.ne.s32.totalorder %v546, %v564
      %vm573 = vcmp.ne.s32.totalorder %v546, %v565
      %vm574 = vmxor %vm536, 1
      %vm575 = vmxor %vm537, 1
      %vm576 = vmxor %vm538, 1
      %vm577 = vmxor %vm539, 1
      %vm578 = vmxor %vm540, 1
      %vm579 = vmxor %vm541, 1
      %vm580 = vmxor %vm542, 1
      %vm581 = vmxor %vm543, 1
      %v582 = vsel %vm544, 1, 0
      %v583 = vlaneseq
      %v584 = vshrl.u32 %v583, 7
      %v585 = vsub.s32 0, %v584
      %v586 = vrot.slane %v582, %v585
      %vm587 = vcmp.eq.s32.totalorder %v586, 1
      %vm588 = vmand %vm574, %vm587
      %vm589 = vmand %vm575, %vm587
      %vm590 = vmand %vm576, %vm587
      %vm591 = vmand %vm577, %vm587
      %vm592 = vmand %vm578, %vm587
      %vm593 = vmand %vm579, %vm587
      %vm594 = vmand %vm580, %vm587
      %vm595 = vmand %vm581, %vm587
      %vm596 = vmand %vm536, %vm587
      %vm597 = vmand %vm537, %vm587
      %vm598 = vmand %vm538, %vm587
      %vm599 = vmand %vm539, %vm587
      %vm600 = vmand %vm540, %vm587
      %vm601 = vmand %vm541, %vm587
      %vm602 = vmand %vm542, %vm587
      %vm603 = vmand %vm543, %vm587
      %vm604 = vcmp.lt.f32.partialorder %v491, 0.99999
      %vm605 = vcmp.lt.f32.partialorder %v492, 0.99999
      %vm606 = vcmp.lt.f32.partialorder %v493, 0.99999
      %vm607 = vcmp.lt.f32.partialorder %v494, 0.99999
      %vm608 = vcmp.lt.f32.partialorder %v495, 0.99999
      %vm609 = vcmp.lt.f32.partialorder %v496, 0.99999
      %vm610 = vcmp.lt.f32.partialorder %v497, 0.99999
      %vm611 = vcmp.lt.f32.partialorder %v498, 0.99999
      %vm612 = vmand %vm566, %vm604
      %vm613 = vmand %vm567, %vm605
      %vm614 = vmand %vm568, %vm606
      %vm615 = vmand %vm569, %vm607
      %vm616 = vmand %vm570, %vm608
      %vm617 = vmand %vm571, %vm609
      %vm618 = vmand %vm572, %vm610
      %vm619 = vmand %vm573, %vm611
      %vm620 = vmand %vm596, %vm612
      %vm621 = vmand %vm597, %vm613
      %vm622 = vmand %vm598, %vm614
      %vm623 = vmand %vm599, %vm615
      %vm624 = vmand %vm600, %vm616
      %vm625 = vmand %vm601, %vm617
      %vm626 = vmand %vm602, %vm618
      %vm627 = vmand %vm603, %vm619
      %v628 = vsel %vm588, %v491, -1e+30
      %v629 = vsel %vm589, %v492, -1e+30
      %v630 = vsel %vm590, %v493, -1e+30
      %v631 = vsel %vm591, %v494, -1e+30
      %v632 = vsel %vm592, %v495, -1e+30
      %v633 = vsel %vm593, %v496, -1e+30
      %v634 = vsel %vm594, %v497, -1e+30
      %v635 = vsel %vm595, %v498, -1e+30
      %636 = vmax.xlane.f32.xlu0 %v628
      %v637 = vpop.xlane.xlu0 %636
      %638 = vmax.xlane.f32.xlu0 %v629
      %v639 = vpop.xlane.xlu0 %638
      %640 = vmax.xlane.f32.xlu0 %v630
      %v641 = vpop.xlane.xlu0 %640
      %642 = vmax.xlane.f32.xlu0 %v631
      %v643 = vpop.xlane.xlu0 %642
      %644 = vmax.xlane.f32.xlu0 %v632
      %v645 = vpop.xlane.xlu0 %644
      %646 = vmax.xlane.f32.xlu0 %v633
      %v647 = vpop.xlane.xlu0 %646
      %648 = vmax.xlane.f32.xlu0 %v634
      %v649 = vpop.xlane.xlu0 %648
      %650 = vmax.xlane.f32.xlu0 %v635
      %v651 = vpop.xlane.xlu0 %650
      %v652 = vsel %vm620, %v491, 1e+30
      %v653 = vsel %vm621, %v492, 1e+30
      %v654 = vsel %vm622, %v493, 1e+30
      %v655 = vsel %vm623, %v494, 1e+30
      %v656 = vsel %vm624, %v495, 1e+30
      %v657 = vsel %vm625, %v496, 1e+30
      %v658 = vsel %vm626, %v497, 1e+30
      %v659 = vsel %vm627, %v498, 1e+30
      %660 = vmin.xlane.f32.xlu0 %v652
      %v661 = vpop.xlane.xlu0 %660
      %662 = vmin.xlane.f32.xlu0 %v653
      %v663 = vpop.xlane.xlu0 %662
      %664 = vmin.xlane.f32.xlu0 %v654
      %v665 = vpop.xlane.xlu0 %664
      %666 = vmin.xlane.f32.xlu0 %v655
      %v667 = vpop.xlane.xlu0 %666
      %668 = vmin.xlane.f32.xlu0 %v656
      %v669 = vpop.xlane.xlu0 %668
      %670 = vmin.xlane.f32.xlu0 %v657
      %v671 = vpop.xlane.xlu0 %670
      %672 = vmin.xlane.f32.xlu0 %v658
      %v673 = vpop.xlane.xlu0 %672
      %674 = vmin.xlane.f32.xlu0 %v659
      %v675 = vpop.xlane.xlu0 %674
      %v676 = vsub.f32 %v491, 0.5
      %v677 = vsub.f32 %v492, 0.5
      %v678 = vsub.f32 %v493, 0.5
      %v679 = vsub.f32 %v494, 0.5
      %v680 = vsub.f32 %v495, 0.5
      %v681 = vsub.f32 %v496, 0.5
      %v682 = vsub.f32 %v497, 0.5
      %v683 = vsub.f32 %v498, 0.5
      %v684 = vadd.f32 %v637, -0.4
      %v685 = vadd.f32 %v639, -0.4
      %v686 = vadd.f32 %v641, -0.4
      %v687 = vadd.f32 %v643, -0.4
      %v688 = vadd.f32 %v645, -0.4
      %v689 = vadd.f32 %v647, -0.4
      %v690 = vadd.f32 %v649, -0.4
      %v691 = vadd.f32 %v651, -0.4
      %v692 = vsub.f32 %v661, 0.6
      %v693 = vsub.f32 %v663, 0.6
      %v694 = vsub.f32 %v665, 0.6
      %v695 = vsub.f32 %v667, 0.6
      %v696 = vsub.f32 %v669, 0.6
      %v697 = vsub.f32 %v671, 0.6
      %v698 = vsub.f32 %v673, 0.6
      %v699 = vsub.f32 %v675, 0.6
      %vm700 = vcmp.lt.f32.partialorder %v676, %v684
      %vm701 = vcmp.lt.f32.partialorder %v677, %v685
      %vm702 = vcmp.lt.f32.partialorder %v678, %v686
      %vm703 = vcmp.lt.f32.partialorder %v679, %v687
      %vm704 = vcmp.lt.f32.partialorder %v680, %v688
      %vm705 = vcmp.lt.f32.partialorder %v681, %v689
      %vm706 = vcmp.lt.f32.partialorder %v682, %v690
      %vm707 = vcmp.lt.f32.partialorder %v683, %v691
      %vm708 = vmand %vm620, %vm700
      %vm709 = vmand %vm621, %vm701
      %vm710 = vmand %vm622, %vm702
      %vm711 = vmand %vm623, %vm703
      %vm712 = vmand %vm624, %vm704
      %vm713 = vmand %vm625, %vm705
      %vm714 = vmand %vm626, %vm706
      %vm715 = vmand %vm627, %vm707
      %vm716 = vcmp.gt.f32.partialorder %v676, %v692
      %vm717 = vcmp.gt.f32.partialorder %v677, %v693
      %vm718 = vcmp.gt.f32.partialorder %v678, %v694
      %vm719 = vcmp.gt.f32.partialorder %v679, %v695
      %vm720 = vcmp.gt.f32.partialorder %v680, %v696
      %vm721 = vcmp.gt.f32.partialorder %v681, %v697
      %vm722 = vcmp.gt.f32.partialorder %v682, %v698
      %vm723 = vcmp.gt.f32.partialorder %v683, %v699
      %vm724 = vmand %vm588, %vm716
      %vm725 = vmand %vm589, %vm717
      %vm726 = vmand %vm590, %vm718
      %vm727 = vmand %vm591, %vm719
      %vm728 = vmand %vm592, %vm720
      %vm729 = vmand %vm593, %vm721
      %vm730 = vmand %vm594, %vm722
      %vm731 = vmand %vm595, %vm723
      %v732 = vmul.f32 %v676, -2.88539
      %v733 = vmul.f32 %v677, -2.88539
      %v734 = vmul.f32 %v678, -2.88539
      %v735 = vmul.f32 %v679, -2.88539
      %v736 = vmul.f32 %v680, -2.88539
      %v737 = vmul.f32 %v681, -2.88539
      %v738 = vmul.f32 %v682, -2.88539
      %v739 = vmul.f32 %v683, -2.88539
      %v740 = vpow.pop %v732
      %v741 = vpow.pop %v733
      %v742 = vpow.pop %v734
      %v743 = vpow.pop %v735
      %v744 = vpow.pop %v736
      %v745 = vpow.pop %v737
      %v746 = vpow.pop %v738
      %v747 = vpow.pop %v739
      %v748 = vsel %vm708, %v740, 0.0
      %v749 = vsel %vm709, %v741, 0.0
      %v750 = vsel %vm710, %v742, 0.0
      %v751 = vsel %vm711, %v743, 0.0
      %v752 = vsel %vm712, %v744, 0.0
      %v753 = vsel %vm713, %v745, 0.0
      %v754 = vsel %vm714, %v746, 0.0
      %v755 = vsel %vm715, %v747, 0.0
      %756 = vadd.xlane.f32.xlu0 %v748
      %v757 = vpop.xlane.xlu0 %756
      %758 = vadd.xlane.f32.xlu0 %v749
      %v759 = vpop.xlane.xlu0 %758
      %760 = vadd.xlane.f32.xlu0 %v750
      %v761 = vpop.xlane.xlu0 %760
      %762 = vadd.xlane.f32.xlu0 %v751
      %v763 = vpop.xlane.xlu0 %762
      %764 = vadd.xlane.f32.xlu0 %v752
      %v765 = vpop.xlane.xlu0 %764
      %766 = vadd.xlane.f32.xlu0 %v753
      %v767 = vpop.xlane.xlu0 %766
      %768 = vadd.xlane.f32.xlu0 %v754
      %v769 = vpop.xlane.xlu0 %768
      %770 = vadd.xlane.f32.xlu0 %v755
      %v771 = vpop.xlane.xlu0 %770
      %v772 = vmul.f32 %v676, 72.13475
      %v773 = vmul.f32 %v677, 72.13475
      %v774 = vmul.f32 %v678, 72.13475
      %v775 = vmul.f32 %v679, 72.13475
      %v776 = vmul.f32 %v680, 72.13475
      %v777 = vmul.f32 %v681, 72.13475
      %v778 = vmul.f32 %v682, 72.13475
      %v779 = vmul.f32 %v683, 72.13475
      %v780 = vpow.pop %v772
      %v781 = vpow.pop %v773
      %v782 = vpow.pop %v774
      %v783 = vpow.pop %v775
      %v784 = vpow.pop %v776
      %v785 = vpow.pop %v777
      %v786 = vpow.pop %v778
      %v787 = vpow.pop %v779
      %v788 = vsel %vm724, %v780, 0.0
      %v789 = vsel %vm725, %v781, 0.0
      %v790 = vsel %vm726, %v782, 0.0
      %v791 = vsel %vm727, %v783, 0.0
      %v792 = vsel %vm728, %v784, 0.0
      %v793 = vsel %vm729, %v785, 0.0
      %v794 = vsel %vm730, %v786, 0.0
      %v795 = vsel %vm731, %v787, 0.0
      %796 = vadd.xlane.f32.xlu0 %v788
      %v797 = vpop.xlane.xlu0 %796
      %798 = vadd.xlane.f32.xlu0 %v789
      %v799 = vpop.xlane.xlu0 %798
      %800 = vadd.xlane.f32.xlu0 %v790
      %v801 = vpop.xlane.xlu0 %800
      %802 = vadd.xlane.f32.xlu0 %v791
      %v803 = vpop.xlane.xlu0 %802
      %804 = vadd.xlane.f32.xlu0 %v792
      %v805 = vpop.xlane.xlu0 %804
      %806 = vadd.xlane.f32.xlu0 %v793
      %v807 = vpop.xlane.xlu0 %806
      %808 = vadd.xlane.f32.xlu0 %v794
      %v809 = vpop.xlane.xlu0 %808
      %810 = vadd.xlane.f32.xlu0 %v795
      %v811 = vpop.xlane.xlu0 %810
      %v812 = vadd.f32 %v757, 1.0
      %v813 = vadd.f32 %v759, 1.0
      %v814 = vadd.f32 %v761, 1.0
      %v815 = vadd.f32 %v763, 1.0
      %v816 = vadd.f32 %v765, 1.0
      %v817 = vadd.f32 %v767, 1.0
      %v818 = vadd.f32 %v769, 1.0
      %v819 = vadd.f32 %v771, 1.0
      %v820 = vlog2.pop %v812
      %v821 = vmul.f32 %v820, 0.6931472
      %v822 = vlog2.pop %v813
      %v823 = vmul.f32 %v822, 0.6931472
      %v824 = vlog2.pop %v814
      %v825 = vmul.f32 %v824, 0.6931472
      %v826 = vlog2.pop %v815
      %v827 = vmul.f32 %v826, 0.6931472
      %v828 = vlog2.pop %v816
      %v829 = vmul.f32 %v828, 0.6931472
      %v830 = vlog2.pop %v817
      %v831 = vmul.f32 %v830, 0.6931472
      %v832 = vlog2.pop %v818
      %v833 = vmul.f32 %v832, 0.6931472
      %v834 = vlog2.pop %v819
      %v835 = vmul.f32 %v834, 0.6931472
      %v836 = vmul.f32 %v821, 0.5
      %v837 = vmul.f32 %v823, 0.5
      %v838 = vmul.f32 %v825, 0.5
      %v839 = vmul.f32 %v827, 0.5
      %v840 = vmul.f32 %v829, 0.5
      %v841 = vmul.f32 %v831, 0.5
      %v842 = vmul.f32 %v833, 0.5
      %v843 = vmul.f32 %v835, 0.5
      %v844 = vadd.f32 %v797, 1.0
      %v845 = vadd.f32 %v799, 1.0
      %v846 = vadd.f32 %v801, 1.0
      %v847 = vadd.f32 %v803, 1.0
      %v848 = vadd.f32 %v805, 1.0
      %v849 = vadd.f32 %v807, 1.0
      %v850 = vadd.f32 %v809, 1.0
      %v851 = vadd.f32 %v811, 1.0
      %v852 = vlog2.pop %v844
      %v853 = vmul.f32 %v852, 0.6931472
      %v854 = vlog2.pop %v845
      %v855 = vmul.f32 %v854, 0.6931472
      %v856 = vlog2.pop %v846
      %v857 = vmul.f32 %v856, 0.6931472
      %v858 = vlog2.pop %v847
      %v859 = vmul.f32 %v858, 0.6931472
      %v860 = vlog2.pop %v848
      %v861 = vmul.f32 %v860, 0.6931472
      %v862 = vlog2.pop %v849
      %v863 = vmul.f32 %v862, 0.6931472
      %v864 = vlog2.pop %v850
      %v865 = vmul.f32 %v864, 0.6931472
      %v866 = vlog2.pop %v851
      %v867 = vmul.f32 %v866, 0.6931472
      %v868 = vmul.f32 %v853, 0.02
      %v869 = vmul.f32 %v855, 0.02
      %v870 = vmul.f32 %v857, 0.02
      %v871 = vmul.f32 %v859, 0.02
      %v872 = vmul.f32 %v861, 0.02
      %v873 = vmul.f32 %v863, 0.02
      %v874 = vmul.f32 %v865, 0.02
      %v875 = vmul.f32 %v867, 0.02
      %v876 = vadd.f32 %v836, %v868
      %v877 = vadd.f32 %v837, %v869
      %v878 = vadd.f32 %v838, %v870
      %v879 = vadd.f32 %v839, %v871
      %v880 = vadd.f32 %v840, %v872
      %v881 = vadd.f32 %v841, %v873
      %v882 = vadd.f32 %v842, %v874
      %v883 = vadd.f32 %v843, %v875
      %vm884 = vcmask 7168
      %885 = vst.msk [vmem:[%s297] sm:$0xff] %vm884, %v876
      %886 = vst.msk [vmem:[%s297 + $0x8] sm:$0xff] %vm884, %v877
      %887 = vst.msk [vmem:[%s297 + $0x10] sm:$0xff] %vm884, %v878
      %888 = vst.msk [vmem:[%s297 + $0x18] sm:$0xff] %vm884, %v879
      %889 = vst.msk [vmem:[%s297 + $0x20] sm:$0xff] %vm884, %v880
      %890 = vst.msk [vmem:[%s297 + $0x28] sm:$0xff] %vm884, %v881
      %891 = vst.msk [vmem:[%s297 + $0x30] sm:$0xff] %vm884, %v882
      %892 = vst.msk [vmem:[%s297 + $0x38] sm:$0xff] %vm884, %v883
      %s893 = smul.u32 8, %s17
      %p894 = scmp.lt.s32.totalorder %s893, 15
      %s895 = scalar_select %p894, %s893, 15
      %s896 = smul.addr %s895, 8
      %s897 = scalar_lea.vmem %s6, %s896
      // Predicated region
      $region45: #{tpu_custom_call.1} parent=43 // pred_check
        %p898 = pneg %p176
      $region46: #{tpu_custom_call.1} parent=43 // pred_check_branch
        %900 = sbr.rel (%p898) target = $region48
      $region47: #{tpu_custom_call.1} parent=43 // pred_region
        %s901 = smul.u32 8, %s17
      $region48: #{tpu_custom_call.1} parent=43 // pred_fallthru
        _
    $region44: #{tpu_custom_call.1} parent=5 // pred_fallthru
      _
    %p902 = scmp.le.s32.totalorder 2, %s12
    // Predicated region
    $region49: #{tpu_custom_call.1} parent=5 // pred_check
      %p903 = pneg %p902
    $region50: #{tpu_custom_call.1} parent=5 // pred_check_branch
      %905 = sbr.rel (%p903) target = $region52
    $region51: #{tpu_custom_call.1} parent=5 // pred_region
      %s906 = ssub.s32 %s12, 2
      // Predicated region
      $region53: #{tpu_custom_call.1} parent=51 // pred_check
        %p907 = pneg %p182
      $region54: #{tpu_custom_call.1} parent=51 // pred_check_branch
        %909 = sbr.rel (%p907) target = $region56
      $region55: #{tpu_custom_call.1} parent=51 // pred_region
        %s910 = smul.u32 8, %s18
        %p911 = scmp.lt.s32.totalorder %s910, 15
        %s912 = scalar_select %p911, %s910, 15
        %s913 = smul.addr %s912, 8
        %s914 = scalar_lea.vmem %s6, %s913
      $region56: #{tpu_custom_call.1} parent=51 // pred_fallthru
        _
    $region52: #{tpu_custom_call.1} parent=5 // pred_fallthru
      _
  $region6: #{tpu_custom_call.1} parent=0 // loop_footer
    %s16 = sadd.s32 1, %s12
  $region7: #{tpu_custom_call.1} parent=0 // loop_footer_branch
    %11 = sbr.rel target = $region3
  $region8: #{tpu_custom_call.1} parent=0 // loop_exit
    _

</llo_original>
